<compile_context>
chip_gen: v7x
topology: tpu7x:2x2x1
jax: 0.10.0
libtpu: 0.0.40
codegen_flags: <defaults>
</compile_context>

<pallas_src>
import functools

import numpy as np

import jax
import jax.numpy as jnp
from jax import lax
from jax.experimental import pallas as pl
from jax.experimental.pallas import tpu as pltpu


# ----------------------------------------------------------------------------
# Pallas kernel: whole bottleneck block, Nb batch images per grid step.
# TODO(synk): for production MobileNetV2 sizes (e.g. 112x112, Cmid up to 576)
# switch to spatial row tiles with kh-1 halo rows sized against v7x's 64 MiB
# VMEM (set vmem_limit_bytes explicitly); not needed at these test shapes.
# ----------------------------------------------------------------------------
def _bottleneck_kernel(*refs, H, W, kh, kw, stride, add_residual, Nb):
    if stride > 1:
        (x_ref, w1_ref, bmid_ref, dw_ref, mask_ref,
         w2_ref, b2_ref, sel_ref, o_ref) = refs
    else:
        (x_ref, w1_ref, bmid_ref, dw_ref, mask_ref,
         w2_ref, b2_ref, o_ref) = refs
        sel_ref = None

    HW = H * W
    ph, pw = (kh - 1) // 2, (kw - 1) // 2
    ctr = ph * kw + pw                       # zero-offset tap (always in-image)

    # Shared (per-step) operands, loaded once and reused across the Nb images.
    w1 = w1_ref[...]                         # (Cmid, Cin)  bf16, BN scale folded
    w2 = w2_ref[...]                         # (Cout, Cmid) bf16, BN scale folded
    dw = dw_ref[...]                         # (Cmid, kh*kw) f32, BN scale folded
    masks = mask_ref[...]                    # (kh*kw, HW)  f32 0/1 validity
    bmid = bmid_ref[...]                     # (Cmid, 2): [pw1 bias | dw bias]
    b1 = bmid[:, 0:1]
    bdw = bmid[:, 1:2]
    b2 = b2_ref[...]                         # (Cout, 1)

    for b in range(Nb):
        x = x_ref[b]                         # (Cin, HW) f32

        # ---- pw1: 1x1 conv (channel-major MXU matmul) + bias + ReLU6 -------
        h = jnp.dot(w1, x.astype(jnp.bfloat16),
                    preferred_element_type=jnp.float32)        # (Cmid, HW)
        h = jnp.clip(h + b1, 0.0, 6.0)

        # ---- fused depthwise branches (dw_LoRA_1 + dw_LoRA_2) --------------
        # Each tap is an XLU lane-roll of the register-resident h; positions
        # that would read out-of-image (incl. the circular wrap) are killed by
        # a 0/1 mask multiply.  Centre tap needs no roll and no mask.
        acc = h * dw[:, ctr:ctr + 1]
        for di in range(kh):
            for dj in range(kw):
                t = di * kw + dj
                if t == ctr:
                    continue
                shift = (di - ph) * W + (dj - pw)
                r = pltpu.roll(h, (-shift) % HW, 1)   # r[p] == h[p + shift]
                acc = acc + (r * dw[:, t:t + 1]) * masks[t:t + 1, :]
        acc = jnp.clip(acc + bdw, 0.0, 6.0)                    # (Cmid, HW)

        # ---- pw2: 1x1 conv + bias (+ strided subsample, + residual) --------
        out = jnp.dot(w2, acc.astype(jnp.bfloat16),
                      preferred_element_type=jnp.float32)      # (Cout, HW)
        if stride > 1:
            # 0/1 selection of the strided output columns, in bf16 (exact for
            # 0/1, single-pass MXU).  pw2 is applied first since Cout << Cmid.
            # TODO(synk): for production shapes fold the stride into the tap
            # evaluation instead of a dense selection matmul.
            out = jnp.dot(out.astype(jnp.bfloat16), sel_ref[...],
                          preferred_element_type=jnp.float32)  # (Cout, Ho*Wo)
        out = out + b2
        if add_residual:
            out = out + x
        o_ref[b] = out.astype(o_ref.dtype)


# ----------------------------------------------------------------------------
# Wrapper: BlockSpecs / grid over batch (Nb images per grid step).
# ----------------------------------------------------------------------------
def linear_bottleneck_forward(x_nchw, params, *, stride, kernel_size=(3, 3),
                              images_per_step=None):
    N, Cin, H, W = x_nchw.shape
    kh, kw = kernel_size
    assert kh == kw, "fused depthwise branches require a square kernel_size"
    Cmid = params["w1"].shape[0]
    Cout = params["w2"].shape[0]
    ph, pw = (kh - 1) // 2, (kw - 1) // 2
    Ho = (H + 2 * ph - kh) // stride + 1
    Wo = (W + 2 * pw - kw) // stride + 1
    HW, HoWo = H * W, Ho * Wo
    add_residual = (stride == 1 and Cin == Cout)

    # Images per grid step: amortize per-step overhead, but keep >=2 parallel
    # grid steps when possible so v7x's two TensorCores both get work.
    if images_per_step is None:
        Nb = 1
        for cand in range(min(8, max(1, N // 2)), 0, -1):
            if N % cand == 0:
                Nb = cand
                break
    else:
        Nb = images_per_step
    assert N % Nb == 0

    # NCHW -> (N, C, H*W): free reshape, no transpose / HBM relayout.
    x_flat = x_nchw.reshape(N, Cin, HW)

    # Host-precomputed per-tap 0/1 validity masks for the flattened shifts.
    ii, jj = np.meshgrid(np.arange(H), np.arange(W), indexing="ij")
    masks = np.zeros((kh * kw, HW), np.float32)
    for di in range(kh):
        for dj in range(kw):
            ok = ((ii + di - ph >= 0) & (ii + di - ph < H) &
                  (jj + dj - pw >= 0) & (jj + dj - pw < W))
            masks[di * kw + dj] = ok.reshape(-1).astype(np.float32)
    masks = jnp.asarray(masks)

    operands = [x_flat, params["w1"], params["bmid"], params["dw"],
                masks, params["w2"], params["b2"]]

    if stride > 1:
        # Strided-output column-selection matrix, bf16 (0/1 is exact in bf16).
        sel_np = np.zeros((HW, HoWo), np.float32)
        for io in range(Ho):
            for jo in range(Wo):
                sel_np[(io * stride) * W + jo * stride, io * Wo + jo] = 1.0
        operands.append(jnp.asarray(sel_np).astype(jnp.bfloat16))

    kernel = functools.partial(
        _bottleneck_kernel, H=H, W=W, kh=kh, kw=kw,
        stride=stride, add_residual=add_residual, Nb=Nb)

    def full_spec(p):
        nd = p.ndim
        return pl.BlockSpec(p.shape, lambda n, _nd=nd: (0,) * _nd)

    grid_spec = pltpu.PrefetchScalarGridSpec(
        num_scalar_prefetch=0,
        grid=(N // Nb,),
        in_specs=[pl.BlockSpec((Nb, Cin, HW), lambda n: (n, 0, 0))]
                 + [full_spec(p) for p in operands[1:]],
        out_specs=pl.BlockSpec((Nb, Cout, HoWo), lambda n: (n, 0, 0)),
    )

    out_flat = pl.pallas_call(
        kernel,
        out_shape=jax.ShapeDtypeStruct((N, Cout, HoWo), x_nchw.dtype),
        grid_spec=grid_spec,
        compiler_params=pltpu.CompilerParams(
            dimension_semantics=("parallel",)),
    )(*operands)

    # (N, Cout, Ho*Wo) -> NCHW: free reshape, no transpose.
    return out_flat.reshape(N, Cout, Ho, Wo)


# ----------------------------------------------------------------------------
# Deterministic parameter construction (PyTorch layout) + host-side folding.
# ----------------------------------------------------------------------------
def init_params(key, in_channels, out_channels, t, kernel_size):
    kh, kw = kernel_size
    Cmid = in_channels * t
    ks = jax.random.split(key, 20)
    nrm = lambda k, shape, s=0.1: (s * jax.random.normal(k, shape)).astype(jnp.float32)
    uni = lambda k, shape: jax.random.uniform(k, shape, jnp.float32, 0.5, 1.5)
    return dict(
        # pw1 conv + BN
        w_pw1=nrm(ks[0], (Cmid, in_channels, 1, 1)), b_pw1=nrm(ks[1], (Cmid,)),
        g1=uni(ks[2], (Cmid,)), be1=nrm(ks[3], (Cmid,)),
        m1=nrm(ks[4], (Cmid,)), v1=uni(ks[5], (Cmid,)),
        # depthwise convs + shared BN
        w_dw1=nrm(ks[6], (Cmid, 1, kh, kw)), b_dw1=nrm(ks[7], (Cmid,)),
        w_dw2=nrm(ks[8], (Cmid, 1, kw, kh)), b_dw2=nrm(ks[9], (Cmid,)),
        gd=uni(ks[10], (Cmid,)), bed=nrm(ks[11], (Cmid,)),
        md=nrm(ks[12], (Cmid,)), vd=uni(ks[13], (Cmid,)),
        # pw2 conv + BN
        w_pw2=nrm(ks[14], (out_channels, Cmid, 1, 1)), b_pw2=nrm(ks[15], (out_channels,)),
        g2=uni(ks[16], (out_channels,)), be2=nrm(ks[17], (out_channels,)),
        m2=nrm(ks[18], (out_channels,)), v2=uni(ks[19], (out_channels,)),
    )


def fold_params(raw, eps=1e-5):
    """Fold eval-mode BN scales into the conv weights; keep only biases."""
    assert raw["w_dw1"].shape == raw["w_dw2"].shape, "square kernels only"
    Cmid = raw["w_pw1"].shape[0]
    s1 = raw["g1"] / jnp.sqrt(raw["v1"] + eps)
    b1 = (raw["b_pw1"] - raw["m1"]) * s1 + raw["be1"]
    sdw = raw["gd"] / jnp.sqrt(raw["vd"] + eps)
    bdw = (raw["b_dw1"] + raw["b_dw2"] - raw["md"]) * sdw + raw["bed"]
    s2 = raw["g2"] / jnp.sqrt(raw["v2"] + eps)
    b2 = (raw["b_pw2"] - raw["m2"]) * s2 + raw["be2"]
    # BN scales folded per output channel; 1x1 weights pre-cast to bf16 so the
    # kernel feeds the MXU directly.  Depthwise taps stay f32 (VPU math).
    w1 = (raw["w_pw1"][:, :, 0, 0] * s1[:, None]).astype(jnp.bfloat16)      # (Cmid, Cin)
    w2 = (raw["w_pw2"][:, :, 0, 0] * s2[:, None]).astype(jnp.bfloat16)      # (Cout, Cmid)
    dw = ((raw["w_dw1"][:, 0] + raw["w_dw2"][:, 0]).reshape(Cmid, -1)
          * sdw[:, None])                                                   # (Cmid, kh*kw)
    return {
        "w1": w1, "w2": w2, "dw": dw,
        "bmid": jnp.stack([b1, bdw], axis=1),     # (Cmid, 2): [pw1 bias | dw bias]
        "b2": b2[:, None],                        # (Cout, 1)
    }


# ----------------------------------------------------------------------------
# Pure-JAX reference (mirrors the PyTorch forward, eval-mode BN).
# ----------------------------------------------------------------------------
def reference_forward(x, raw, *, stride, kernel_size, eps=1e-5):
    kh, kw = kernel_size
    Cin = x.shape[1]
    Cmid = raw["w_pw1"].shape[0]
    Cout = raw["w_pw2"].shape[0]
    dn = ("NCHW", "OIHW", "NCHW")

    def conv(inp, w, s, padding, groups):
        return lax.conv_general_dilated(
            inp, w, window_strides=(s, s), padding=padding,
            dimension_numbers=lax.conv_dimension_numbers(inp.shape, w.shape, dn),
            feature_group_count=groups)

    def bn(inp, g, b, m, v):
        sc = (g / jnp.sqrt(v + eps))[None, :, None, None]
        return (inp - m[None, :, None, None]) * sc + b[None, :, None, None]

    out = conv(x, raw["w_pw1"], 1, [(0, 0), (0, 0)], 1) + raw["b_pw1"][None, :, None, None]
    out = jnp.clip(bn(out, raw["g1"], raw["be1"], raw["m1"], raw["v1"]), 0.0, 6.0)
    r1 = conv(out, raw["w_dw1"], stride,
              [((kh - 1) // 2,) * 2, ((kw - 1) // 2,) * 2], Cmid) + raw["b_dw1"][None, :, None, None]
    r2 = conv(out, raw["w_dw2"], stride,
              [((kw - 1) // 2,) * 2, ((kh - 1) // 2,) * 2], Cmid) + raw["b_dw2"][None, :, None, None]
    res = jnp.clip(bn(r1 + r2, raw["gd"], raw["bed"], raw["md"], raw["vd"]), 0.0, 6.0)
    res = conv(res, raw["w_pw2"], 1, [(0, 0), (0, 0)], 1) + raw["b_pw2"][None, :, None, None]
    res = bn(res, raw["g2"], raw["be2"], raw["m2"], raw["v2"])
    if stride == 1 and Cin == Cout:
        res = res + x
    return res


if __name__ == "__main__":
    def run_case(key, *, N, Cin, Cout, t, stride, ksz, H, W):
        kx, kp = jax.random.split(key)
        x = jax.random.normal(kx, (N, Cin, H, W), jnp.float32)
        raw = init_params(kp, Cin, Cout, t, ksz)
        params = fold_params(raw)
        out = linear_bottleneck_forward(x, params, stride=stride, kernel_size=ksz)
        out = jax.block_until_ready(out)
        ref = reference_forward(x, raw, stride=stride, kernel_size=ksz)
        if not jnp.allclose(out, ref, atol=2e-2, rtol=2e-2):
            max_err = float(jnp.max(jnp.abs(out - ref)))
            raise AssertionError(
                f"Pallas mismatch vs reference (stride={stride}): max abs err {max_err}")

    k1, k2 = jax.random.split(jax.random.PRNGKey(0))
    # stride==1, Cin==Cout -> residual path; 2 images per grid step, 2 steps.
    run_case(k1, N=4, Cin=4, Cout=4, t=6, stride=1, ksz=(3, 3), H=16, W=16)
    # stride==2 -> strided-subsample path, no residual.
    run_case(k2, N=2, Cin=4, Cout=8, t=6, stride=2, ksz=(3, 3), H=16, W=16)

    print("KERNEL_OK")
</pallas_src>

<mosaic_0001>
module attributes {stable_mosaic.version = 11 : i64} {
  func.func @_bottleneck_kernel(%arg0: i32, %arg1: memref<2x4x256xf32, #tpu.memory_space<vmem>>, %arg2: memref<24x4xbf16, #tpu.memory_space<vmem>>, %arg3: memref<24x2xf32, #tpu.memory_space<vmem>>, %arg4: memref<24x9xf32, #tpu.memory_space<vmem>>, %arg5: memref<9x256xf32, #tpu.memory_space<vmem>>, %arg6: memref<4x24xbf16, #tpu.memory_space<vmem>>, %arg7: memref<4x1xf32, #tpu.memory_space<vmem>>, %arg8: memref<2x4x256xf32, #tpu.memory_space<vmem>>) attributes {dimension_semantics = [#tpu.dimension_semantics<parallel>], iteration_bounds = array<i64: 2>, scalar_prefetch = 0 : i64, scratch_operands = 0 : i64, tpu.core_type = #tpu.core_type<tc>, window_params = [{transform_indices = @transform_0, window_bounds = array<i64: 2, 4, 256>}, {pipeline_mode = #tpu.pipeline_mode<synchronous>, transform_indices = @transform_1, window_bounds = array<i64: 24, 4>}, {pipeline_mode = #tpu.pipeline_mode<synchronous>, transform_indices = @transform_2, window_bounds = array<i64: 24, 2>}, {pipeline_mode = #tpu.pipeline_mode<synchronous>, transform_indices = @transform_3, window_bounds = array<i64: 24, 9>}, {pipeline_mode = #tpu.pipeline_mode<synchronous>, transform_indices = @transform_4, window_bounds = array<i64: 9, 256>}, {pipeline_mode = #tpu.pipeline_mode<synchronous>, transform_indices = @transform_5, window_bounds = array<i64: 4, 24>}, {pipeline_mode = #tpu.pipeline_mode<synchronous>, transform_indices = @transform_6, window_bounds = array<i64: 4, 1>}, {transform_indices = @transform_7, window_bounds = array<i64: 2, 4, 256>}]} {
    %c0 = arith.constant 0 : index
    %c0_0 = arith.constant 0 : index
    %0 = vector.load %arg2[%c0, %c0_0] : memref<24x4xbf16, #tpu.memory_space<vmem>>, vector<24x4xbf16>
    %c0_1 = arith.constant 0 : index
    %c0_2 = arith.constant 0 : index
    %1 = vector.load %arg6[%c0_1, %c0_2] : memref<4x24xbf16, #tpu.memory_space<vmem>>, vector<4x24xbf16>
    %c0_3 = arith.constant 0 : index
    %c0_4 = arith.constant 0 : index
    %2 = vector.load %arg4[%c0_3, %c0_4] : memref<24x9xf32, #tpu.memory_space<vmem>>, vector<24x9xf32>
    %c0_5 = arith.constant 0 : index
    %c0_6 = arith.constant 0 : index
    %3 = vector.load %arg5[%c0_5, %c0_6] : memref<9x256xf32, #tpu.memory_space<vmem>>, vector<9x256xf32>
    %c0_7 = arith.constant 0 : index
    %c0_8 = arith.constant 0 : index
    %4 = vector.load %arg3[%c0_7, %c0_8] : memref<24x2xf32, #tpu.memory_space<vmem>>, vector<24x2xf32>
    %5 = vector.extract_strided_slice %4 {offsets = [0, 0], sizes = [24, 1], strides = [1, 1]} : vector<24x2xf32> to vector<24x1xf32>
    %6 = vector.extract_strided_slice %4 {offsets = [0, 1], sizes = [24, 1], strides = [1, 1]} : vector<24x2xf32> to vector<24x1xf32>
    %c0_9 = arith.constant 0 : index
    %c0_10 = arith.constant 0 : index
    %7 = vector.load %arg7[%c0_9, %c0_10] : memref<4x1xf32, #tpu.memory_space<vmem>>, vector<4x1xf32>
    %c0_11 = arith.constant 0 : index
    %c0_12 = arith.constant 0 : index
    %c0_13 = arith.constant 0 : index
    %8 = vector.load %arg1[%c0_11, %c0_12, %c0_13] : memref<2x4x256xf32, #tpu.memory_space<vmem>>, vector<1x4x256xf32>
    %9 = vector.shape_cast %8 : vector<1x4x256xf32> to vector<4x256xf32>
    %10 = arith.truncf %9 : vector<4x256xf32> to vector<4x256xbf16>
    %cst = arith.constant dense<0.000000e+00> : vector<24x256xf32>
    %11 = tpu.matmul %0, %10, %cst {dimension_numbers = #tpu.dot_dimension_numbers<[1], [0], [0], [1], [0, 0, 1, 1], [], []>} : vector<24x4xbf16>, vector<4x256xbf16>, vector<24x256xf32> -> vector<24x256xf32>
    %12 = vector.broadcast %5 : vector<24x1xf32> to vector<24x256xf32>
    %13 = arith.addf %11, %12 : vector<24x256xf32>
    %cst_14 = arith.constant 0.000000e+00 : f32
    %cst_15 = arith.constant 6.000000e+00 : f32
    %14 = vector.broadcast %cst_14 : f32 to vector<24x256xf32>
    %15 = arith.maximumf %14, %13 : vector<24x256xf32>
    %16 = vector.broadcast %cst_15 : f32 to vector<24x256xf32>
    %17 = arith.minimumf %16, %15 : vector<24x256xf32>
    %18 = vector.extract_strided_slice %2 {offsets = [0, 4], sizes = [24, 1], strides = [1, 1]} : vector<24x9xf32> to vector<24x1xf32>
    %19 = vector.broadcast %18 : vector<24x1xf32> to vector<24x256xf32>
    %20 = arith.mulf %17, %19 : vector<24x256xf32>
    %c17_i32 = arith.constant 17 : i32
    %21 = tpu.dynamic_rotate %17 by %c17_i32 dim 1 : vector<24x256xf32>, i32 -> vector<24x256xf32>
    %22 = vector.extract_strided_slice %2 {offsets = [0, 0], sizes = [24, 1], strides = [1, 1]} : vector<24x9xf32> to vector<24x1xf32>
    %23 = vector.broadcast %22 : vector<24x1xf32> to vector<24x256xf32>
    %24 = arith.mulf %21, %23 : vector<24x256xf32>
    %25 = vector.extract_strided_slice %3 {offsets = [0, 0], sizes = [1, 256], strides = [1, 1]} : vector<9x256xf32> to vector<1x256xf32>
    %26 = vector.broadcast %25 : vector<1x256xf32> to vector<24x256xf32>
    %27 = arith.mulf %24, %26 : vector<24x256xf32>
    %28 = arith.addf %20, %27 : vector<24x256xf32>
    %c16_i32 = arith.constant 16 : i32
    %29 = tpu.dynamic_rotate %17 by %c16_i32 dim 1 : vector<24x256xf32>, i32 -> vector<24x256xf32>
    %30 = vector.extract_strided_slice %2 {offsets = [0, 1], sizes = [24, 1], strides = [1, 1]} : vector<24x9xf32> to vector<24x1xf32>
    %31 = vector.broadcast %30 : vector<24x1xf32> to vector<24x256xf32>
    %32 = arith.mulf %29, %31 : vector<24x256xf32>
    %33 = vector.extract_strided_slice %3 {offsets = [1, 0], sizes = [1, 256], strides = [1, 1]} : vector<9x256xf32> to vector<1x256xf32>
    %34 = vector.broadcast %33 : vector<1x256xf32> to vector<24x256xf32>
    %35 = arith.mulf %32, %34 : vector<24x256xf32>
    %36 = arith.addf %28, %35 : vector<24x256xf32>
    %c15_i32 = arith.constant 15 : i32
    %37 = tpu.dynamic_rotate %17 by %c15_i32 dim 1 : vector<24x256xf32>, i32 -> vector<24x256xf32>
    %38 = vector.extract_strided_slice %2 {offsets = [0, 2], sizes = [24, 1], strides = [1, 1]} : vector<24x9xf32> to vector<24x1xf32>
    %39 = vector.broadcast %38 : vector<24x1xf32> to vector<24x256xf32>
    %40 = arith.mulf %37, %39 : vector<24x256xf32>
    %41 = vector.extract_strided_slice %3 {offsets = [2, 0], sizes = [1, 256], strides = [1, 1]} : vector<9x256xf32> to vector<1x256xf32>
    %42 = vector.broadcast %41 : vector<1x256xf32> to vector<24x256xf32>
    %43 = arith.mulf %40, %42 : vector<24x256xf32>
    %44 = arith.addf %36, %43 : vector<24x256xf32>
    %c1_i32 = arith.constant 1 : i32
    %45 = tpu.dynamic_rotate %17 by %c1_i32 dim 1 : vector<24x256xf32>, i32 -> vector<24x256xf32>
    %46 = vector.extract_strided_slice %2 {offsets = [0, 3], sizes = [24, 1], strides = [1, 1]} : vector<24x9xf32> to vector<24x1xf32>
    %47 = vector.broadcast %46 : vector<24x1xf32> to vector<24x256xf32>
    %48 = arith.mulf %45, %47 : vector<24x256xf32>
    %49 = vector.extract_strided_slice %3 {offsets = [3, 0], sizes = [1, 256], strides = [1, 1]} : vector<9x256xf32> to vector<1x256xf32>
    %50 = vector.broadcast %49 : vector<1x256xf32> to vector<24x256xf32>
    %51 = arith.mulf %48, %50 : vector<24x256xf32>
    %52 = arith.addf %44, %51 : vector<24x256xf32>
    %c255_i32 = arith.constant 255 : i32
    %53 = tpu.dynamic_rotate %17 by %c255_i32 dim 1 : vector<24x256xf32>, i32 -> vector<24x256xf32>
    %54 = vector.extract_strided_slice %2 {offsets = [0, 5], sizes = [24, 1], strides = [1, 1]} : vector<24x9xf32> to vector<24x1xf32>
    %55 = vector.broadcast %54 : vector<24x1xf32> to vector<24x256xf32>
    %56 = arith.mulf %53, %55 : vector<24x256xf32>
    %57 = vector.extract_strided_slice %3 {offsets = [5, 0], sizes = [1, 256], strides = [1, 1]} : vector<9x256xf32> to vector<1x256xf32>
    %58 = vector.broadcast %57 : vector<1x256xf32> to vector<24x256xf32>
    %59 = arith.mulf %56, %58 : vector<24x256xf32>
    %60 = arith.addf %52, %59 : vector<24x256xf32>
    %c241_i32 = arith.constant 241 : i32
    %61 = tpu.dynamic_rotate %17 by %c241_i32 dim 1 : vector<24x256xf32>, i32 -> vector<24x256xf32>
    %62 = vector.extract_strided_slice %2 {offsets = [0, 6], sizes = [24, 1], strides = [1, 1]} : vector<24x9xf32> to vector<24x1xf32>
    %63 = vector.broadcast %62 : vector<24x1xf32> to vector<24x256xf32>
    %64 = arith.mulf %61, %63 : vector<24x256xf32>
    %65 = vector.extract_strided_slice %3 {offsets = [6, 0], sizes = [1, 256], strides = [1, 1]} : vector<9x256xf32> to vector<1x256xf32>
    %66 = vector.broadcast %65 : vector<1x256xf32> to vector<24x256xf32>
    %67 = arith.mulf %64, %66 : vector<24x256xf32>
    %68 = arith.addf %60, %67 : vector<24x256xf32>
    %c240_i32 = arith.constant 240 : i32
    %69 = tpu.dynamic_rotate %17 by %c240_i32 dim 1 : vector<24x256xf32>, i32 -> vector<24x256xf32>
    %70 = vector.extract_strided_slice %2 {offsets = [0, 7], sizes = [24, 1], strides = [1, 1]} : vector<24x9xf32> to vector<24x1xf32>
    %71 = vector.broadcast %70 : vector<24x1xf32> to vector<24x256xf32>
    %72 = arith.mulf %69, %71 : vector<24x256xf32>
    %73 = vector.extract_strided_slice %3 {offsets = [7, 0], sizes = [1, 256], strides = [1, 1]} : vector<9x256xf32> to vector<1x256xf32>
    %74 = vector.broadcast %73 : vector<1x256xf32> to vector<24x256xf32>
    %75 = arith.mulf %72, %74 : vector<24x256xf32>
    %76 = arith.addf %68, %75 : vector<24x256xf32>
    %c239_i32 = arith.constant 239 : i32
    %77 = tpu.dynamic_rotate %17 by %c239_i32 dim 1 : vector<24x256xf32>, i32 -> vector<24x256xf32>
    %78 = vector.extract_strided_slice %2 {offsets = [0, 8], sizes = [24, 1], strides = [1, 1]} : vector<24x9xf32> to vector<24x1xf32>
    %79 = vector.broadcast %78 : vector<24x1xf32> to vector<24x256xf32>
    %80 = arith.mulf %77, %79 : vector<24x256xf32>
    %81 = vector.extract_strided_slice %3 {offsets = [8, 0], sizes = [1, 256], strides = [1, 1]} : vector<9x256xf32> to vector<1x256xf32>
    %82 = vector.broadcast %81 : vector<1x256xf32> to vector<24x256xf32>
    %83 = arith.mulf %80, %82 : vector<24x256xf32>
    %84 = arith.addf %76, %83 : vector<24x256xf32>
    %85 = vector.broadcast %6 : vector<24x1xf32> to vector<24x256xf32>
    %86 = arith.addf %84, %85 : vector<24x256xf32>
    %cst_16 = arith.constant 0.000000e+00 : f32
    %cst_17 = arith.constant 6.000000e+00 : f32
    %87 = vector.broadcast %cst_16 : f32 to vector<24x256xf32>
    %88 = arith.maximumf %87, %86 : vector<24x256xf32>
    %89 = vector.broadcast %cst_17 : f32 to vector<24x256xf32>
    %90 = arith.minimumf %89, %88 : vector<24x256xf32>
    %91 = arith.truncf %90 : vector<24x256xf32> to vector<24x256xbf16>
    %cst_18 = arith.constant dense<0.000000e+00> : vector<4x256xf32>
    %92 = tpu.matmul %1, %91, %cst_18 {dimension_numbers = #tpu.dot_dimension_numbers<[1], [0], [0], [1], [0, 0, 1, 1], [], []>} : vector<4x24xbf16>, vector<24x256xbf16>, vector<4x256xf32> -> vector<4x256xf32>
    %93 = vector.broadcast %7 : vector<4x1xf32> to vector<4x256xf32>
    %94 = arith.addf %92, %93 : vector<4x256xf32>
    %95 = arith.addf %94, %9 : vector<4x256xf32>
    %c0_19 = arith.constant 0 : index
    %c0_20 = arith.constant 0 : index
    %c0_21 = arith.constant 0 : index
    %96 = vector.load %arg8[%c0_19, %c0_20, %c0_21] : memref<2x4x256xf32, #tpu.memory_space<vmem>>, vector<1x4x256xf32>
    %97 = vector.shape_cast %96 : vector<1x4x256xf32> to vector<4x256xf32>
    %98 = vector.shape_cast %95 : vector<4x256xf32> to vector<1x4x256xf32>
    tpu.vector_store %arg8[%c0_19, %c0_20, %c0_21], %98 {strides = array<i32>} : memref<2x4x256xf32, #tpu.memory_space<vmem>>, vector<1x4x256xf32>,
    %c1 = arith.constant 1 : index
    %c0_22 = arith.constant 0 : index
    %c0_23 = arith.constant 0 : index
    %99 = vector.load %arg1[%c1, %c0_22, %c0_23] : memref<2x4x256xf32, #tpu.memory_space<vmem>>, vector<1x4x256xf32>
    %100 = vector.shape_cast %99 : vector<1x4x256xf32> to vector<4x256xf32>
    %101 = arith.truncf %100 : vector<4x256xf32> to vector<4x256xbf16>
    %cst_24 = arith.constant dense<0.000000e+00> : vector<24x256xf32>
    %102 = tpu.matmul %0, %101, %cst_24 {dimension_numbers = #tpu.dot_dimension_numbers<[1], [0], [0], [1], [0, 0, 1, 1], [], []>} : vector<24x4xbf16>, vector<4x256xbf16>, vector<24x256xf32> -> vector<24x256xf32>
    %103 = vector.broadcast %5 : vector<24x1xf32> to vector<24x256xf32>
    %104 = arith.addf %102, %103 : vector<24x256xf32>
    %cst_25 = arith.constant 0.000000e+00 : f32
    %cst_26 = arith.constant 6.000000e+00 : f32
    %105 = vector.broadcast %cst_25 : f32 to vector<24x256xf32>
    %106 = arith.maximumf %105, %104 : vector<24x256xf32>
    %107 = vector.broadcast %cst_26 : f32 to vector<24x256xf32>
    %108 = arith.minimumf %107, %106 : vector<24x256xf32>
    %109 = vector.extract_strided_slice %2 {offsets = [0, 4], sizes = [24, 1], strides = [1, 1]} : vector<24x9xf32> to vector<24x1xf32>
    %110 = vector.broadcast %109 : vector<24x1xf32> to vector<24x256xf32>
    %111 = arith.mulf %108, %110 : vector<24x256xf32>
    %c17_i32_27 = arith.constant 17 : i32
    %112 = tpu.dynamic_rotate %108 by %c17_i32_27 dim 1 : vector<24x256xf32>, i32 -> vector<24x256xf32>
    %113 = vector.extract_strided_slice %2 {offsets = [0, 0], sizes = [24, 1], strides = [1, 1]} : vector<24x9xf32> to vector<24x1xf32>
    %114 = vector.broadcast %113 : vector<24x1xf32> to vector<24x256xf32>
    %115 = arith.mulf %112, %114 : vector<24x256xf32>
    %116 = vector.extract_strided_slice %3 {offsets = [0, 0], sizes = [1, 256], strides = [1, 1]} : vector<9x256xf32> to vector<1x256xf32>
    %117 = vector.broadcast %116 : vector<1x256xf32> to vector<24x256xf32>
    %118 = arith.mulf %115, %117 : vector<24x256xf32>
    %119 = arith.addf %111, %118 : vector<24x256xf32>
    %c16_i32_28 = arith.constant 16 : i32
    %120 = tpu.dynamic_rotate %108 by %c16_i32_28 dim 1 : vector<24x256xf32>, i32 -> vector<24x256xf32>
    %121 = vector.extract_strided_slice %2 {offsets = [0, 1], sizes = [24, 1], strides = [1, 1]} : vector<24x9xf32> to vector<24x1xf32>
    %122 = vector.broadcast %121 : vector<24x1xf32> to vector<24x256xf32>
    %123 = arith.mulf %120, %122 : vector<24x256xf32>
    %124 = vector.extract_strided_slice %3 {offsets = [1, 0], sizes = [1, 256], strides = [1, 1]} : vector<9x256xf32> to vector<1x256xf32>
    %125 = vector.broadcast %124 : vector<1x256xf32> to vector<24x256xf32>
    %126 = arith.mulf %123, %125 : vector<24x256xf32>
    %127 = arith.addf %119, %126 : vector<24x256xf32>
    %c15_i32_29 = arith.constant 15 : i32
    %128 = tpu.dynamic_rotate %108 by %c15_i32_29 dim 1 : vector<24x256xf32>, i32 -> vector<24x256xf32>
    %129 = vector.extract_strided_slice %2 {offsets = [0, 2], sizes = [24, 1], strides = [1, 1]} : vector<24x9xf32> to vector<24x1xf32>
    %130 = vector.broadcast %129 : vector<24x1xf32> to vector<24x256xf32>
    %131 = arith.mulf %128, %130 : vector<24x256xf32>
    %132 = vector.extract_strided_slice %3 {offsets = [2, 0], sizes = [1, 256], strides = [1, 1]} : vector<9x256xf32> to vector<1x256xf32>
    %133 = vector.broadcast %132 : vector<1x256xf32> to vector<24x256xf32>
    %134 = arith.mulf %131, %133 : vector<24x256xf32>
    %135 = arith.addf %127, %134 : vector<24x256xf32>
    %c1_i32_30 = arith.constant 1 : i32
    %136 = tpu.dynamic_rotate %108 by %c1_i32_30 dim 1 : vector<24x256xf32>, i32 -> vector<24x256xf32>
    %137 = vector.extract_strided_slice %2 {offsets = [0, 3], sizes = [24, 1], strides = [1, 1]} : vector<24x9xf32> to vector<24x1xf32>
    %138 = vector.broadcast %137 : vector<24x1xf32> to vector<24x256xf32>
    %139 = arith.mulf %136, %138 : vector<24x256xf32>
    %140 = vector.extract_strided_slice %3 {offsets = [3, 0], sizes = [1, 256], strides = [1, 1]} : vector<9x256xf32> to vector<1x256xf32>
    %141 = vector.broadcast %140 : vector<1x256xf32> to vector<24x256xf32>
    %142 = arith.mulf %139, %141 : vector<24x256xf32>
    %143 = arith.addf %135, %142 : vector<24x256xf32>
    %c255_i32_31 = arith.constant 255 : i32
    %144 = tpu.dynamic_rotate %108 by %c255_i32_31 dim 1 : vector<24x256xf32>, i32 -> vector<24x256xf32>
    %145 = vector.extract_strided_slice %2 {offsets = [0, 5], sizes = [24, 1], strides = [1, 1]} : vector<24x9xf32> to vector<24x1xf32>
    %146 = vector.broadcast %145 : vector<24x1xf32> to vector<24x256xf32>
    %147 = arith.mulf %144, %146 : vector<24x256xf32>
    %148 = vector.extract_strided_slice %3 {offsets = [5, 0], sizes = [1, 256], strides = [1, 1]} : vector<9x256xf32> to vector<1x256xf32>
    %149 = vector.broadcast %148 : vector<1x256xf32> to vector<24x256xf32>
    %150 = arith.mulf %147, %149 : vector<24x256xf32>
    %151 = arith.addf %143, %150 : vector<24x256xf32>
    %c241_i32_32 = arith.constant 241 : i32
    %152 = tpu.dynamic_rotate %108 by %c241_i32_32 dim 1 : vector<24x256xf32>, i32 -> vector<24x256xf32>
    %153 = vector.extract_strided_slice %2 {offsets = [0, 6], sizes = [24, 1], strides = [1, 1]} : vector<24x9xf32> to vector<24x1xf32>
    %154 = vector.broadcast %153 : vector<24x1xf32> to vector<24x256xf32>
    %155 = arith.mulf %152, %154 : vector<24x256xf32>
    %156 = vector.extract_strided_slice %3 {offsets = [6, 0], sizes = [1, 256], strides = [1, 1]} : vector<9x256xf32> to vector<1x256xf32>
    %157 = vector.broadcast %156 : vector<1x256xf32> to vector<24x256xf32>
    %158 = arith.mulf %155, %157 : vector<24x256xf32>
    %159 = arith.addf %151, %158 : vector<24x256xf32>
    %c240_i32_33 = arith.constant 240 : i32
    %160 = tpu.dynamic_rotate %108 by %c240_i32_33 dim 1 : vector<24x256xf32>, i32 -> vector<24x256xf32>
    %161 = vector.extract_strided_slice %2 {offsets = [0, 7], sizes = [24, 1], strides = [1, 1]} : vector<24x9xf32> to vector<24x1xf32>
    %162 = vector.broadcast %161 : vector<24x1xf32> to vector<24x256xf32>
    %163 = arith.mulf %160, %162 : vector<24x256xf32>
    %164 = vector.extract_strided_slice %3 {offsets = [7, 0], sizes = [1, 256], strides = [1, 1]} : vector<9x256xf32> to vector<1x256xf32>
    %165 = vector.broadcast %164 : vector<1x256xf32> to vector<24x256xf32>
    %166 = arith.mulf %163, %165 : vector<24x256xf32>
    %167 = arith.addf %159, %166 : vector<24x256xf32>
    %c239_i32_34 = arith.constant 239 : i32
    %168 = tpu.dynamic_rotate %108 by %c239_i32_34 dim 1 : vector<24x256xf32>, i32 -> vector<24x256xf32>
    %169 = vector.extract_strided_slice %2 {offsets = [0, 8], sizes = [24, 1], strides = [1, 1]} : vector<24x9xf32> to vector<24x1xf32>
    %170 = vector.broadcast %169 : vector<24x1xf32> to vector<24x256xf32>
    %171 = arith.mulf %168, %170 : vector<24x256xf32>
    %172 = vector.extract_strided_slice %3 {offsets = [8, 0], sizes = [1, 256], strides = [1, 1]} : vector<9x256xf32> to vector<1x256xf32>
    %173 = vector.broadcast %172 : vector<1x256xf32> to vector<24x256xf32>
    %174 = arith.mulf %171, %173 : vector<24x256xf32>
    %175 = arith.addf %167, %174 : vector<24x256xf32>
    %176 = vector.broadcast %6 : vector<24x1xf32> to vector<24x256xf32>
    %177 = arith.addf %175, %176 : vector<24x256xf32>
    %cst_35 = arith.constant 0.000000e+00 : f32
    %cst_36 = arith.constant 6.000000e+00 : f32
    %178 = vector.broadcast %cst_35 : f32 to vector<24x256xf32>
    %179 = arith.maximumf %178, %177 : vector<24x256xf32>
    %180 = vector.broadcast %cst_36 : f32 to vector<24x256xf32>
    %181 = arith.minimumf %180, %179 : vector<24x256xf32>
    %182 = arith.truncf %181 : vector<24x256xf32> to vector<24x256xbf16>
    %cst_37 = arith.constant dense<0.000000e+00> : vector<4x256xf32>
    %183 = tpu.matmul %1, %182, %cst_37 {dimension_numbers = #tpu.dot_dimension_numbers<[1], [0], [0], [1], [0, 0, 1, 1], [], []>} : vector<4x24xbf16>, vector<24x256xbf16>, vector<4x256xf32> -> vector<4x256xf32>
    %184 = vector.broadcast %7 : vector<4x1xf32> to vector<4x256xf32>
    %185 = arith.addf %183, %184 : vector<4x256xf32>
    %186 = arith.addf %185, %100 : vector<4x256xf32>
    %c1_38 = arith.constant 1 : index
    %c0_39 = arith.constant 0 : index
    %c0_40 = arith.constant 0 : index
    %187 = vector.load %arg8[%c1_38, %c0_39, %c0_40] : memref<2x4x256xf32, #tpu.memory_space<vmem>>, vector<1x4x256xf32>
    %188 = vector.shape_cast %187 : vector<1x4x256xf32> to vector<4x256xf32>
    %189 = vector.shape_cast %186 : vector<4x256xf32> to vector<1x4x256xf32>
    tpu.vector_store %arg8[%c1_38, %c0_39, %c0_40], %189 {strides = array<i32>} : memref<2x4x256xf32, #tpu.memory_space<vmem>>, vector<1x4x256xf32>,
    return
  }
  func.func @transform_0(%arg0: i32) -> (i32, i32, i32) {
    %c0_i32 = arith.constant 0 : i32
    %c0_i32_0 = arith.constant 0 : i32
    %c0_i32_1 = arith.constant 0 : i32
    return %arg0, %c0_i32, %c0_i32_0 : i32, i32, i32
  }
  func.func @transform_1(%arg0: i32) -> (i32, i32) {
    %c0_i32 = arith.constant 0 : i32
    %c0_i32_0 = arith.constant 0 : i32
    %c0_i32_1 = arith.constant 0 : i32
    return %c0_i32, %c0_i32_0 : i32, i32
  }
  func.func @transform_2(%arg0: i32) -> (i32, i32) {
    %c0_i32 = arith.constant 0 : i32
    %c0_i32_0 = arith.constant 0 : i32
    %c0_i32_1 = arith.constant 0 : i32
    return %c0_i32, %c0_i32_0 : i32, i32
  }
  func.func @transform_3(%arg0: i32) -> (i32, i32) {
    %c0_i32 = arith.constant 0 : i32
    %c0_i32_0 = arith.constant 0 : i32
    %c0_i32_1 = arith.constant 0 : i32
    return %c0_i32, %c0_i32_0 : i32, i32
  }
  func.func @transform_4(%arg0: i32) -> (i32, i32) {
    %c0_i32 = arith.constant 0 : i32
    %c0_i32_0 = arith.constant 0 : i32
    %c0_i32_1 = arith.constant 0 : i32
    return %c0_i32, %c0_i32_0 : i32, i32
  }
  func.func @transform_5(%arg0: i32) -> (i32, i32) {
    %c0_i32 = arith.constant 0 : i32
    %c0_i32_0 = arith.constant 0 : i32
    %c0_i32_1 = arith.constant 0 : i32
    return %c0_i32, %c0_i32_0 : i32, i32
  }
  func.func @transform_6(%arg0: i32) -> (i32, i32) {
    %c0_i32 = arith.constant 0 : i32
    %c0_i32_0 = arith.constant 0 : i32
    %c0_i32_1 = arith.constant 0 : i32
    return %c0_i32, %c0_i32_0 : i32, i32
  }
  func.func @transform_7(%arg0: i32) -> (i32, i32, i32) {
    %c0_i32 = arith.constant 0 : i32
    %c0_i32_0 = arith.constant 0 : i32
    %c0_i32_1 = arith.constant 0 : i32
    return %arg0, %c0_i32, %c0_i32_0 : i32, i32, i32
  }
}

</mosaic_0001>

<llo_original>
// kernel: tpu_custom_call.1
$region0: #{tpu_custom_call.1}
  #allocation0 [shape = 'u32[]', space=smem, size = 0x4, offset = 0x4, fixed_abs, tag = 'smem constant byte address 0x4 - core index']
  #allocation1 [shape = 'u32[144,128]{1,0:T(1,128)}', space=vmem, size = 0x12000, scoped, tag = 'internal scratch']
  %s0 = inlined_call_operand.vmem [shape: f32[4,4,256], index: 0, kind: input, shape index: {}]
  %s1 = inlined_call_operand.vmem [shape: bf16[24,4], index: 1, kind: input, shape index: {}]
  %s2 = inlined_call_operand.vmem [shape: f32[24,2], index: 2, kind: input, shape index: {}]
  %s3 = inlined_call_operand.vmem [shape: f32[24,9], index: 3, kind: input, shape index: {}]
  %s4 = inlined_call_operand.vmem [shape: f32[9,256], index: 4, kind: input, shape index: {}]
  %s5 = inlined_call_operand.vmem [shape: bf16[4,24], index: 5, kind: input, shape index: {}]
  %s6 = inlined_call_operand.vmem [shape: f32[4,1], index: 6, kind: input, shape index: {}]
  %s7 = inlined_call_operand.hbm [shape: f32[4,4,256], index: 7, kind: output, shape index: {}]
  %s8 = sld [smem:[#allocation0]]
  $region61: #{tpu_custom_call.1} parent=0
    _
  %s10 = ssub.s32 1, %s8
  %s11 = scalar_select 0, %s10, %s8
  $region1: #{tpu_custom_call.1} parent=0
    #allocation2 [shape = 'u8[16384]{0}', space=vmem, size = 0x4000, scoped, tag = 'output window, operand 0']
    #allocation3 [shape = 's32[2]{0}', space=sflag, size = 0x8, scoped, tag = 'scoped memory for tpu_custom_call.1']
    %12 = vsyncpa [#allocation3], 0
    %s13 = scalar_lea.sflag [#allocation3], 1
    %14 = vsyncpa %s13, 0
    loop: start=0, step=1, limit=4
    $region2: #{tpu_custom_call.1} parent=1 // loop_pre_header
      _
    $region3: #{tpu_custom_call.1} parent=1 // loop_header
      %s16 = sphi 0, %s20
      %p17 = scmp.ge.s32.totalorder %s16, 4
      %s26 = sphi 0, %s28
      %s29 = sphi 0, %s26
      %s30 = sphi 0, %s29
      %s46 = sphi 0, %s30
      %s50 = sphi 0, %s50
      %s52 = sphi 0, %s50
      %s53 = sphi 0, %s52
      %s67 = sphi 0, %s53
      %s71 = sphi 0, %s71
      %s73 = sphi 0, %s71
      %s74 = sphi 0, %s73
      %s88 = sphi 0, %s74
      %s92 = sphi 0, %s92
      %s94 = sphi 0, %s92
      %s95 = sphi 0, %s94
      %s109 = sphi 0, %s95
      %s113 = sphi 0, %s113
      %s115 = sphi 0, %s113
      %s116 = sphi 0, %s115
      %s130 = sphi 0, %s116
      %s134 = sphi 0, %s134
      %s136 = sphi 0, %s134
      %s137 = sphi 0, %s136
      %s151 = sphi 0, %s137
      %s155 = sphi 0, %s155
      %s157 = sphi 0, %s155
      %s158 = sphi 0, %s157
      %s172 = sphi 0, %s158
      %s178 = sphi 0, %s180
      %s181 = sphi 0, %s178
      %s182 = sphi 0, %s181
      %s198 = sphi 0, %s182
    $region4: #{tpu_custom_call.1} parent=1 // loop_header_branch
      %19 = sbr.rel (%p17) target = $region8
    $region5: #{tpu_custom_call.1} parent=1 // loop_body
      %s21 = ssub.s32 %s16, 1
      %s22 = ssub.s32 %s16, 2
      %s23 = sadd.s32 %s16, 1
      %s24 = ssub.s32 %s16, %s23
      %p25 = scmp.eq.s32.totalorder %s24, 0
      %s27 = sadd.s32 %s26, 1
      %s28 = scalar_select %p25, %s26, %s27
      %p31 = pneg %p25
      %p32 = scmp.eq.s32.totalorder %s16, 1
      %p33 = por %p31, %p32
      %p34 = scmp.ne.s32.totalorder %s26, %s29
      %p35 = scmp.eq.s32.totalorder %s16, 0
      %p36 = por %p34, %p35
      %p37 = scmp.ne.s32.totalorder %s26, %s29
      %p38 = scmp.eq.s32.totalorder %s21, 1
      %p39 = por %p37, %p38
      %p40 = scmp.ne.s32.totalorder %s29, %s30
      %p41 = scmp.eq.s32.totalorder %s21, 0
      %p42 = por %p40, %p41
      %p43 = scmp.ne.s32.totalorder %s29, %s30
      %p44 = scmp.eq.s32.totalorder %s22, 1
      %p45 = por %p43, %p44
      %p47 = scmp.ne.s32.totalorder %s30, %s46
      %p48 = scmp.eq.s32.totalorder %s22, 0
      %p49 = por %p47, %p48
      %s51 = sadd.s32 %s50, 1
      %p54 = scmp.eq.s32.totalorder %s16, 1
      %p55 = scmp.ne.s32.totalorder %s50, %s52
      %p56 = scmp.eq.s32.totalorder %s16, 0
      %p57 = por %p55, %p56
      %p58 = scmp.ne.s32.totalorder %s50, %s52
      %p59 = scmp.eq.s32.totalorder %s21, 1
      %p60 = por %p58, %p59
      %p61 = scmp.ne.s32.totalorder %s52, %s53
      %p62 = scmp.eq.s32.totalorder %s21, 0
      %p63 = por %p61, %p62
      %p64 = scmp.ne.s32.totalorder %s52, %s53
      %p65 = scmp.eq.s32.totalorder %s22, 1
      %p66 = por %p64, %p65
      %p68 = scmp.ne.s32.totalorder %s53, %s67
      %p69 = scmp.eq.s32.totalorder %s22, 0
      %p70 = por %p68, %p69
      %s72 = sadd.s32 %s71, 1
      %p75 = scmp.eq.s32.totalorder %s16, 1
      %p76 = scmp.ne.s32.totalorder %s71, %s73
      %p77 = scmp.eq.s32.totalorder %s16, 0
      %p78 = por %p76, %p77
      %p79 = scmp.ne.s32.totalorder %s71, %s73
      %p80 = scmp.eq.s32.totalorder %s21, 1
      %p81 = por %p79, %p80
      %p82 = scmp.ne.s32.totalorder %s73, %s74
      %p83 = scmp.eq.s32.totalorder %s21, 0
      %p84 = por %p82, %p83
      %p85 = scmp.ne.s32.totalorder %s73, %s74
      %p86 = scmp.eq.s32.totalorder %s22, 1
      %p87 = por %p85, %p86
      %p89 = scmp.ne.s32.totalorder %s74, %s88
      %p90 = scmp.eq.s32.totalorder %s22, 0
      %p91 = por %p89, %p90
      %s93 = sadd.s32 %s92, 1
      %p96 = scmp.eq.s32.totalorder %s16, 1
      %p97 = scmp.ne.s32.totalorder %s92, %s94
      %p98 = scmp.eq.s32.totalorder %s16, 0
      %p99 = por %p97, %p98
      %p100 = scmp.ne.s32.totalorder %s92, %s94
      %p101 = scmp.eq.s32.totalorder %s21, 1
      %p102 = por %p100, %p101
      %p103 = scmp.ne.s32.totalorder %s94, %s95
      %p104 = scmp.eq.s32.totalorder %s21, 0
      %p105 = por %p103, %p104
      %p106 = scmp.ne.s32.totalorder %s94, %s95
      %p107 = scmp.eq.s32.totalorder %s22, 1
      %p108 = por %p106, %p107
      %p110 = scmp.ne.s32.totalorder %s95, %s109
      %p111 = scmp.eq.s32.totalorder %s22, 0
      %p112 = por %p110, %p111
      %s114 = sadd.s32 %s113, 1
      %p117 = scmp.eq.s32.totalorder %s16, 1
      %p118 = scmp.ne.s32.totalorder %s113, %s115
      %p119 = scmp.eq.s32.totalorder %s16, 0
      %p120 = por %p118, %p119
      %p121 = scmp.ne.s32.totalorder %s113, %s115
      %p122 = scmp.eq.s32.totalorder %s21, 1
      %p123 = por %p121, %p122
      %p124 = scmp.ne.s32.totalorder %s115, %s116
      %p125 = scmp.eq.s32.totalorder %s21, 0
      %p126 = por %p124, %p125
      %p127 = scmp.ne.s32.totalorder %s115, %s116
      %p128 = scmp.eq.s32.totalorder %s22, 1
      %p129 = por %p127, %p128
      %p131 = scmp.ne.s32.totalorder %s116, %s130
      %p132 = scmp.eq.s32.totalorder %s22, 0
      %p133 = por %p131, %p132
      %s135 = sadd.s32 %s134, 1
      %p138 = scmp.eq.s32.totalorder %s16, 1
      %p139 = scmp.ne.s32.totalorder %s134, %s136
      %p140 = scmp.eq.s32.totalorder %s16, 0
      %p141 = por %p139, %p140
      %p142 = scmp.ne.s32.totalorder %s134, %s136
      %p143 = scmp.eq.s32.totalorder %s21, 1
      %p144 = por %p142, %p143
      %p145 = scmp.ne.s32.totalorder %s136, %s137
      %p146 = scmp.eq.s32.totalorder %s21, 0
      %p147 = por %p145, %p146
      %p148 = scmp.ne.s32.totalorder %s136, %s137
      %p149 = scmp.eq.s32.totalorder %s22, 1
      %p150 = por %p148, %p149
      %p152 = scmp.ne.s32.totalorder %s137, %s151
      %p153 = scmp.eq.s32.totalorder %s22, 0
      %p154 = por %p152, %p153
      %s156 = sadd.s32 %s155, 1
      %p159 = scmp.eq.s32.totalorder %s16, 1
      %p160 = scmp.ne.s32.totalorder %s155, %s157
      %p161 = scmp.eq.s32.totalorder %s16, 0
      %p162 = por %p160, %p161
      %p163 = scmp.ne.s32.totalorder %s155, %s157
      %p164 = scmp.eq.s32.totalorder %s21, 1
      %p165 = por %p163, %p164
      %p166 = scmp.ne.s32.totalorder %s157, %s158
      %p167 = scmp.eq.s32.totalorder %s21, 0
      %p168 = por %p166, %p167
      %p169 = scmp.ne.s32.totalorder %s157, %s158
      %p170 = scmp.eq.s32.totalorder %s22, 1
      %p171 = por %p169, %p170
      %p173 = scmp.ne.s32.totalorder %s158, %s172
      %p174 = scmp.eq.s32.totalorder %s22, 0
      %p175 = por %p173, %p174
      %s176 = ssub.s32 %s16, %s23
      %p177 = scmp.eq.s32.totalorder %s176, 0
      %s179 = sadd.s32 %s178, 1
      %s180 = scalar_select %p177, %s178, %s179
      %p183 = pneg %p177
      %p184 = scmp.eq.s32.totalorder %s16, 1
      %p185 = por %p183, %p184
      %p186 = scmp.ne.s32.totalorder %s178, %s181
      %p187 = scmp.eq.s32.totalorder %s16, 0
      %p188 = por %p186, %p187
      %p189 = scmp.ne.s32.totalorder %s178, %s181
      %p190 = scmp.eq.s32.totalorder %s21, 1
      %p191 = por %p189, %p190
      %p192 = scmp.ne.s32.totalorder %s181, %s182
      %p193 = scmp.eq.s32.totalorder %s21, 0
      %p194 = por %p192, %p193
      %p195 = scmp.ne.s32.totalorder %s181, %s182
      %p196 = scmp.eq.s32.totalorder %s22, 1
      %p197 = por %p195, %p196
      %p199 = scmp.ne.s32.totalorder %s182, %s198
      %p200 = scmp.eq.s32.totalorder %s22, 0
      %p201 = por %p199, %p200
      %p202 = scmp.le.s32.totalorder 1, %s16
      %p203 = scmp.lt.s32.totalorder %s16, 3
      %p204 = pnand %p202, %p203
      %p205 = pneg %p204
      // Predicated region
      $region9: #{tpu_custom_call.1} parent=5 // pred_check
        _
      $region10: #{tpu_custom_call.1} parent=5 // pred_check_branch
        %207 = sbr.rel (%p204) target = $region12
      $region11: #{tpu_custom_call.1} parent=5 // pred_region
        %s208 = ssub.s32 %s16, 1
        // Predicated region
        $region13: #{tpu_custom_call.1} parent=11 // pred_check
          %p209 = pneg %p63
        $region14: #{tpu_custom_call.1} parent=11 // pred_check_branch
          %211 = sbr.rel (%p209) target = $region16
        $region15: #{tpu_custom_call.1} parent=11 // pred_region
          _
        $region16: #{tpu_custom_call.1} parent=11 // pred_fallthru
          _
        // Predicated region
        $region17: #{tpu_custom_call.1} parent=11 // pred_check
          %p212 = pneg %p84
        $region18: #{tpu_custom_call.1} parent=11 // pred_check_branch
          %214 = sbr.rel (%p212) target = $region20
        $region19: #{tpu_custom_call.1} parent=11 // pred_region
          _
        $region20: #{tpu_custom_call.1} parent=11 // pred_fallthru
          _
        // Predicated region
        $region21: #{tpu_custom_call.1} parent=11 // pred_check
          %p215 = pneg %p105
        $region22: #{tpu_custom_call.1} parent=11 // pred_check_branch
          %217 = sbr.rel (%p215) target = $region24
        $region23: #{tpu_custom_call.1} parent=11 // pred_region
          _
        $region24: #{tpu_custom_call.1} parent=11 // pred_fallthru
          _
        // Predicated region
        $region25: #{tpu_custom_call.1} parent=11 // pred_check
          %p218 = pneg %p126
        $region26: #{tpu_custom_call.1} parent=11 // pred_check_branch
          %220 = sbr.rel (%p218) target = $region28
        $region27: #{tpu_custom_call.1} parent=11 // pred_region
          _
        $region28: #{tpu_custom_call.1} parent=11 // pred_fallthru
          _
        // Predicated region
        $region29: #{tpu_custom_call.1} parent=11 // pred_check
          %p221 = pneg %p147
        $region30: #{tpu_custom_call.1} parent=11 // pred_check_branch
          %223 = sbr.rel (%p221) target = $region32
        $region31: #{tpu_custom_call.1} parent=11 // pred_region
          _
        $region32: #{tpu_custom_call.1} parent=11 // pred_fallthru
          _
        // Predicated region
        $region33: #{tpu_custom_call.1} parent=11 // pred_check
          %p224 = pneg %p168
        $region34: #{tpu_custom_call.1} parent=11 // pred_check_branch
          %226 = sbr.rel (%p224) target = $region36
        $region35: #{tpu_custom_call.1} parent=11 // pred_region
          _
        $region36: #{tpu_custom_call.1} parent=11 // pred_fallthru
          _
      $region12: #{tpu_custom_call.1} parent=5 // pred_fallthru
        _
      %p227 = scmp.lt.s32.totalorder %s16, 2
      // Predicated region
      $region37: #{tpu_custom_call.1} parent=5 // pred_check
        %p228 = pneg %p227
      $region38: #{tpu_custom_call.1} parent=5 // pred_check_branch
        %230 = sbr.rel (%p228) target = $region40
      $region39: #{tpu_custom_call.1} parent=5 // pred_region
        // Predicated region
        $region41: #{tpu_custom_call.1} parent=39 // pred_check
          %p231 = pneg %p36
        $region42: #{tpu_custom_call.1} parent=39 // pred_check_branch
          %233 = sbr.rel (%p231) target = $region44
        $region43: #{tpu_custom_call.1} parent=39 // pred_region
          %s234 = smul.u32 2, %s16
          %p235 = scmp.lt.s32.totalorder %s234, 3
          %s236 = scalar_select %p235, %s234, 3
          %s237 = smul.addr %s236, 2
          %s238 = smul.addr %s237, 4
          %s239 = scalar_lea.vmem %s0, %s238
          %s240 = smul.u32 2, %s16
        $region44: #{tpu_custom_call.1} parent=39 // pred_fallthru
          _
      $region40: #{tpu_custom_call.1} parent=5 // pred_fallthru
        _
      %p241 = scmp.le.s32.totalorder 1, %s16
      %p242 = scmp.lt.s32.totalorder %s16, 3
      %p243 = pnand %p241, %p242
      %p244 = pneg %p243
      // Predicated region
      $region45: #{tpu_custom_call.1} parent=5 // pred_check
        _
      $region46: #{tpu_custom_call.1} parent=5 // pred_check_branch
        %246 = sbr.rel (%p243) target = $region48
      $region47: #{tpu_custom_call.1} parent=5 // pred_region
        %s247 = ssub.s32 %s16, 1
        %s248 = smul.u32 2, %s21
        %p249 = scmp.lt.s32.totalorder %s248, 3
        %s250 = scalar_select %p249, %s248, 3
        %s251 = smul.addr %s250, 2
        %s252 = smul.addr %s251, 4
        %s253 = scalar_lea.vmem %s0, %s252
        %p254 = pneg %p42
        %p255 = pneg %p39
        %p256 = pneg %p63
        %p257 = pneg %p60
        %p258 = pneg %p84
        %p259 = pneg %p81
        %p260 = pneg %p105
        %p261 = pneg %p102
        %p262 = pneg %p126
        %p263 = pneg %p123
        %p264 = pneg %p147
        %p265 = pneg %p144
        %p266 = pneg %p168
        %p267 = pneg %p165
        %p268 = pneg %p194
        %p269 = pneg %p191
        %s270 = sand.u32 %s181, 1
        %s271 = scalar_lea.sflag [#allocation3], %s270
        %s272 = sand.u32 %s181, 1
        %s273 = smul.addr %s272, 16
        %s274 = scalar_lea.vmem [#allocation2], %s273
        %s275 = smul.u32 2, %s21
        %p276 = scmp.lt.s32.totalorder %s275, 3
        %s277 = scalar_select %p276, %s275, 3
        %s278 = smul.addr %s277, 2
        %s279 = smul.addr %s278, 4
        %s280 = scalar_lea.vmem %s0, %s279
        %s281 = smul.u32 2, %s21
        %s282 = smul.u32 2, %s21
        %v284 = vld [vmem:[%s1] sm:$0xf]
        %v285 = vld [vmem:[%s1 + $0x4] sm:$0xf]
        %v286 = vld [vmem:[%s1 + $0x8] sm:$0xf]
        %v287 = vld [vmem:[%s5] sm:$0x3]
        %v288 = vld [vmem:[%s3] sm:$0xff]
        %v289 = vld [vmem:[%s3 + $0x8] sm:$0xff]
        %v290 = vld [vmem:[%s3 + $0x10] sm:$0xff]
        %v291 = vld [vmem:[%s4] sm:$0xff]
        %v292 = vld [vmem:[%s4 + $0x8] sm:$0xff]
        %v293 = vld [vmem:[%s4 + $0x10] sm:$0x1]
        %v294 = vld [vmem:[%s4 + $0x18] sm:$0x1]
        %v295 = vld [vmem:[%s2] sm:$0xff]
        %v296 = vld [vmem:[%s2 + $0x8] sm:$0xff]
        %v297 = vld [vmem:[%s2 + $0x10] sm:$0xff]
        %v298 = vld [vmem:[%s6] sm:$0xf]
        %v299 = vld [vmem:[%s280] sm:$0xff]
        %v301 = vcombine.high %v299, %v299
        %v303 = vpack.c.bf16 %v299, %v299
        %v304 = vpack.c.bf16 %v301, %v301
        %306 = vset.pattern.permute.xlu0 0
        %307 = vperm.xlu0 %306, %v295
        %v308 = vpop.permute.xlu0 %307
        %311 = vset.pattern.permute.xlu0 0
        %312 = vperm.xlu0 %311, %v296
        %v313 = vpop.permute.xlu0 %312
        %316 = vset.pattern.permute.xlu0 0
        %317 = vperm.xlu0 %316, %v297
        %v318 = vpop.permute.xlu0 %317
        %v323 = vunpack.c.l.b16 %v284
        %v324 = vunpack.c.l.b16 %v285
        %v325 = vunpack.c.l.b16 %v286
        %v326 = vpack.c.b16 %v324, %v323
        %v327 = vpack.c.b16 %v325, %v325
        %vm328 = vcmask 31744
        %v330 = vsel %vm328, %v326, 0
        %v333 = vsel %vm328, %v327, 0
        %vm335 = vcmask 1041408
        %v337 = vsel %vm335, %v303, 0
        %v340 = vsel %vm335, %v304, 0
        %342 = vmatprep.subr.bf16.mxu0 %v340
        %343 = vmatpush1.bf16.msra.mxu0 %v337
        %344 = vmatprep.subr.bf16.mxu0 0
        %345 = vmatpush1.bf16.msra.mxu0 0
        %346 = vmatprep.subr.bf16.mxu0 0
        %347 = vmatpush1.bf16.msra.mxu0 0
        %348 = vmatprep.subr.bf16.mxu0 0
        %349 = vmatpush1.bf16.msra.mxu0 0
        %350 = vmatprep.subr.bf16.mxu0 0
        %351 = vmatpush1.bf16.msra.mxu0 0
        %352 = vmatprep.subr.bf16.mxu0 0
        %353 = vmatpush1.bf16.msra.mxu0 0
        %354 = vmatprep.subr.bf16.mxu0 0
        %355 = vmatpush1.bf16.msra.mxu0 0
        %356 = vmatprep.subr.bf16.mxu0 0
        %357 = vmatpush1.bf16.msra.mxu0 0
        %358 = vmatprep.subr.bf16.mxu0 0
        %359 = vmatpush1.bf16.msra.mxu0 0
        %360 = vmatprep.subr.bf16.mxu0 0
        %361 = vmatpush1.bf16.msra.mxu0 0
        %362 = vmatprep.subr.bf16.mxu0 0
        %363 = vmatpush1.bf16.msra.mxu0 0
        %364 = vmatprep.subr.bf16.mxu0 0
        %365 = vmatpush1.bf16.msra.mxu0 0
        %366 = vmatprep.subr.bf16.mxu0 0
        %367 = vmatpush1.bf16.msra.mxu0 0
        %368 = vmatprep.subr.bf16.mxu0 0
        %369 = vmatpush1.bf16.msra.mxu0 0
        %370 = vmatprep.subr.bf16.mxu0 0
        %371 = vmatpush1.bf16.msra.mxu0 0
        %372 = vmatprep.subr.bf16.mxu0 0
        %373 = vmatpush1.bf16.msra.mxu0 0
        %374 = vmatprep.mubr.bf16.mxu0 0
        %375 = vmatmul.mubr.bf16.gmra.mrb[0].mxu0 %v330
        %v376 = vpop.f32.mrb[0].mxu0
        %v377 = vadd.f32 %v308, %v376
        %v378 = vpop.f32.mrb[0].mxu0
        %v379 = vadd.f32 %v308, %v378
        %v380 = vpop.f32.mrb[0].mxu0
        %v381 = vadd.f32 %v313, %v380
        %v382 = vpop.f32.mrb[0].mxu0
        %v383 = vadd.f32 %v313, %v382
        %384 = vmatprep.mubr.bf16.mxu0 0
        %385 = vmatmul.mubr.bf16.gmra.mrb[0].mxu0 %v333
        %v386 = vpop.f32.mrb[0].mxu0
        %v387 = vadd.f32 %v318, %v386
        %v388 = vpop.f32.mrb[0].mxu0
        %v389 = vadd.f32 %v318, %v388
        %v390 = vpop.f32.mrb[0].mxu0
        %v391 = vpop.f32.mrb[0].mxu0
        %392 = vdwg.mxu0
        %v393 = vmax.f32 %v377, 0.0
        %v394 = vmax.f32 %v379, 0.0
        %v395 = vmax.f32 %v381, 0.0
        %v396 = vmax.f32 %v383, 0.0
        %v397 = vmax.f32 %v387, 0.0
        %v398 = vmax.f32 %v389, 0.0
        %v399 = vmin.f32 %v393, 6.0
        %v400 = vmin.f32 %v394, 6.0
        %v401 = vmin.f32 %v395, 6.0
        %v402 = vmin.f32 %v396, 6.0
        %v403 = vmin.f32 %v397, 6.0
        %v404 = vmin.f32 %v398, 6.0
        %406 = vset.pattern.permute.xlu0 4
        %407 = vperm.xlu0 %406, %v288
        %v408 = vpop.permute.xlu0 %407
        %411 = vset.pattern.permute.xlu0 4
        %412 = vperm.xlu0 %411, %v289
        %v413 = vpop.permute.xlu0 %412
        %416 = vset.pattern.permute.xlu0 4
        %417 = vperm.xlu0 %416, %v290
        %v418 = vpop.permute.xlu0 %417
        %v420 = vmul.f32 %v399, %v408
        %v421 = vmul.f32 %v400, %v408
        %v422 = vmul.f32 %v401, %v413
        %v423 = vmul.f32 %v402, %v413
        %v424 = vmul.f32 %v403, %v418
        %v425 = vmul.f32 %v404, %v418
        %426 = vrot.lane.b32.xlu0 %v399, 17
        %v427 = vpop.permute.xlu0 %426
        %428 = vrot.lane.b32.xlu0 %v401, 17
        %v429 = vpop.permute.xlu0 %428
        %430 = vrot.lane.b32.xlu0 %v403, 17
        %v431 = vpop.permute.xlu0 %430
        %432 = vrot.lane.b32.xlu0 %v400, 17
        %v433 = vpop.permute.xlu0 %432
        %434 = vrot.lane.b32.xlu0 %v402, 17
        %v435 = vpop.permute.xlu0 %434
        %436 = vrot.lane.b32.xlu0 %v404, 17
        %v437 = vpop.permute.xlu0 %436
        %v438 = vlaneseq
        %v439 = vand.u32 %v438, 127
        %vm440 = vcmp.lt.s32.totalorder %v439, 17
        %v441 = vsel %vm440, %v427, %v433
        %v442 = vsel %vm440, %v429, %v435
        %v443 = vsel %vm440, %v431, %v437
        %v444 = vsel %vm440, %v433, %v427
        %v445 = vsel %vm440, %v435, %v429
        %v446 = vsel %vm440, %v437, %v431
        %447 = vset.pattern.permute.xlu0 0
        %448 = vperm.xlu0 %447, %v288
        %v449 = vpop.permute.xlu0 %448
        %451 = vset.pattern.permute.xlu0 0
        %452 = vperm.xlu0 %451, %v289
        %v453 = vpop.permute.xlu0 %452
        %455 = vset.pattern.permute.xlu0 0
        %456 = vperm.xlu0 %455, %v290
        %v457 = vpop.permute.xlu0 %456
        %v459 = vmul.f32 %v444, %v449
        %v460 = vmul.f32 %v441, %v449
        %v461 = vmul.f32 %v445, %v453
        %v462 = vmul.f32 %v442, %v453
        %v463 = vmul.f32 %v446, %v457
        %v464 = vmul.f32 %v443, %v457
        %v465 = vlaneseq
        %v466 = vshrl.u32 %v465, 7
        %v467 = vsub.s32 0, %v466
        %v468 = vrot.slane %v291, %v467
        %v469 = vlaneseq
        %v470 = vshrl.u32 %v469, 7
        %v471 = vsub.s32 0, %v470
        %v472 = vrot.slane %v292, %v471
        %v473 = vmul.f32 %v459, %v468
        %v474 = vmul.f32 %v460, %v472
        %v475 = vmul.f32 %v461, %v468
        %v476 = vmul.f32 %v462, %v472
        %v477 = vmul.f32 %v463, %v468
        %v478 = vmul.f32 %v464, %v472
        %v479 = vadd.f32 %v420, %v473
        %v480 = vadd.f32 %v421, %v474
        %v481 = vadd.f32 %v422, %v475
        %v482 = vadd.f32 %v423, %v476
        %v483 = vadd.f32 %v424, %v477
        %v484 = vadd.f32 %v425, %v478
        %485 = vrot.lane.b32.xlu0 %v399, 16
        %v486 = vpop.permute.xlu0 %485
        %487 = vrot.lane.b32.xlu0 %v401, 16
        %v488 = vpop.permute.xlu0 %487
        %489 = vrot.lane.b32.xlu0 %v403, 16
        %v490 = vpop.permute.xlu0 %489
        %491 = vrot.lane.b32.xlu0 %v400, 16
        %v492 = vpop.permute.xlu0 %491
        %493 = vrot.lane.b32.xlu0 %v402, 16
        %v494 = vpop.permute.xlu0 %493
        %495 = vrot.lane.b32.xlu0 %v404, 16
        %v496 = vpop.permute.xlu0 %495
        %vm497 = vcmp.lt.s32.totalorder %v439, 16
        %v498 = vsel %vm497, %v486, %v492
        %v499 = vsel %vm497, %v488, %v494
        %v500 = vsel %vm497, %v490, %v496
        %v501 = vsel %vm497, %v492, %v486
        %v502 = vsel %vm497, %v494, %v488
        %v503 = vsel %vm497, %v496, %v490
        %504 = vset.pattern.permute.xlu0 1
        %505 = vperm.xlu0 %504, %v288
        %v506 = vpop.permute.xlu0 %505
        %508 = vset.pattern.permute.xlu0 1
        %509 = vperm.xlu0 %508, %v289
        %v510 = vpop.permute.xlu0 %509
        %512 = vset.pattern.permute.xlu0 1
        %513 = vperm.xlu0 %512, %v290
        %v514 = vpop.permute.xlu0 %513
        %v516 = vmul.f32 %v501, %v506
        %v517 = vmul.f32 %v498, %v506
        %v518 = vmul.f32 %v502, %v510
        %v519 = vmul.f32 %v499, %v510
        %v520 = vmul.f32 %v503, %v514
        %v521 = vmul.f32 %v500, %v514
        %v522 = vlaneseq
        %v523 = vshrl.u32 %v522, 7
        %v524 = vsub.s32 1, %v523
        %v525 = vrot.slane %v291, %v524
        %v526 = vlaneseq
        %v527 = vshrl.u32 %v526, 7
        %v528 = vsub.s32 1, %v527
        %v529 = vrot.slane %v292, %v528
        %v530 = vmul.f32 %v516, %v525
        %v531 = vmul.f32 %v517, %v529
        %v532 = vmul.f32 %v518, %v525
        %v533 = vmul.f32 %v519, %v529
        %v534 = vmul.f32 %v520, %v525
        %v535 = vmul.f32 %v521, %v529
        %v536 = vadd.f32 %v479, %v530
        %v537 = vadd.f32 %v480, %v531
        %v538 = vadd.f32 %v481, %v532
        %v539 = vadd.f32 %v482, %v533
        %v540 = vadd.f32 %v483, %v534
        %v541 = vadd.f32 %v484, %v535
        %542 = vrot.lane.b32.xlu0 %v399, 15
        %v543 = vpop.permute.xlu0 %542
        %544 = vrot.lane.b32.xlu0 %v401, 15
        %v545 = vpop.permute.xlu0 %544
        %546 = vrot.lane.b32.xlu0 %v403, 15
        %v547 = vpop.permute.xlu0 %546
        %548 = vrot.lane.b32.xlu0 %v400, 15
        %v549 = vpop.permute.xlu0 %548
        %550 = vrot.lane.b32.xlu0 %v402, 15
        %v551 = vpop.permute.xlu0 %550
        %552 = vrot.lane.b32.xlu0 %v404, 15
        %v553 = vpop.permute.xlu0 %552
        %vm554 = vcmp.lt.s32.totalorder %v439, 15
        %v555 = vsel %vm554, %v543, %v549
        %v556 = vsel %vm554, %v545, %v551
        %v557 = vsel %vm554, %v547, %v553
        %v558 = vsel %vm554, %v549, %v543
        %v559 = vsel %vm554, %v551, %v545
        %v560 = vsel %vm554, %v553, %v547
        %561 = vset.pattern.permute.xlu0 2
        %562 = vperm.xlu0 %561, %v288
        %v563 = vpop.permute.xlu0 %562
        %565 = vset.pattern.permute.xlu0 2
        %566 = vperm.xlu0 %565, %v289
        %v567 = vpop.permute.xlu0 %566
        %569 = vset.pattern.permute.xlu0 2
        %570 = vperm.xlu0 %569, %v290
        %v571 = vpop.permute.xlu0 %570
        %v573 = vmul.f32 %v558, %v563
        %v574 = vmul.f32 %v555, %v563
        %v575 = vmul.f32 %v559, %v567
        %v576 = vmul.f32 %v556, %v567
        %v577 = vmul.f32 %v560, %v571
        %v578 = vmul.f32 %v557, %v571
        %v579 = vlaneseq
        %v580 = vshrl.u32 %v579, 7
        %v581 = vsub.s32 2, %v580
        %v582 = vrot.slane %v291, %v581
        %v583 = vlaneseq
        %v584 = vshrl.u32 %v583, 7
        %v585 = vsub.s32 2, %v584
        %v586 = vrot.slane %v292, %v585
        %v587 = vmul.f32 %v573, %v582
        %v588 = vmul.f32 %v574, %v586
        %v589 = vmul.f32 %v575, %v582
        %v590 = vmul.f32 %v576, %v586
        %v591 = vmul.f32 %v577, %v582
        %v592 = vmul.f32 %v578, %v586
        %v593 = vadd.f32 %v536, %v587
        %v594 = vadd.f32 %v537, %v588
        %v595 = vadd.f32 %v538, %v589
        %v596 = vadd.f32 %v539, %v590
        %v597 = vadd.f32 %v540, %v591
        %v598 = vadd.f32 %v541, %v592
        %599 = vrot.lane.b32.xlu0 %v399, 1
        %v600 = vpop.permute.xlu0 %599
        %601 = vrot.lane.b32.xlu0 %v401, 1
        %v602 = vpop.permute.xlu0 %601
        %603 = vrot.lane.b32.xlu0 %v403, 1
        %v604 = vpop.permute.xlu0 %603
        %605 = vrot.lane.b32.xlu0 %v400, 1
        %v606 = vpop.permute.xlu0 %605
        %607 = vrot.lane.b32.xlu0 %v402, 1
        %v608 = vpop.permute.xlu0 %607
        %609 = vrot.lane.b32.xlu0 %v404, 1
        %v610 = vpop.permute.xlu0 %609
        %vm611 = vcmp.lt.s32.totalorder %v439, 1
        %v612 = vsel %vm611, %v600, %v606
        %v613 = vsel %vm611, %v602, %v608
        %v614 = vsel %vm611, %v604, %v610
        %v615 = vsel %vm611, %v606, %v600
        %v616 = vsel %vm611, %v608, %v602
        %v617 = vsel %vm611, %v610, %v604
        %618 = vset.pattern.permute.xlu0 3
        %619 = vperm.xlu0 %618, %v288
        %v620 = vpop.permute.xlu0 %619
        %622 = vset.pattern.permute.xlu0 3
        %623 = vperm.xlu0 %622, %v289
        %v624 = vpop.permute.xlu0 %623
        %626 = vset.pattern.permute.xlu0 3
        %627 = vperm.xlu0 %626, %v290
        %v628 = vpop.permute.xlu0 %627
        %v630 = vmul.f32 %v615, %v620
        %v631 = vmul.f32 %v612, %v620
        %v632 = vmul.f32 %v616, %v624
        %v633 = vmul.f32 %v613, %v624
        %v634 = vmul.f32 %v617, %v628
        %v635 = vmul.f32 %v614, %v628
        %v636 = vlaneseq
        %v637 = vshrl.u32 %v636, 7
        %v638 = vsub.s32 3, %v637
        %v639 = vrot.slane %v291, %v638
        %v640 = vlaneseq
        %v641 = vshrl.u32 %v640, 7
        %v642 = vsub.s32 3, %v641
        %v643 = vrot.slane %v292, %v642
        %v644 = vmul.f32 %v630, %v639
        %v645 = vmul.f32 %v631, %v643
        %v646 = vmul.f32 %v632, %v639
        %v647 = vmul.f32 %v633, %v643
        %v648 = vmul.f32 %v634, %v639
        %v649 = vmul.f32 %v635, %v643
        %v650 = vadd.f32 %v593, %v644
        %v651 = vadd.f32 %v594, %v645
        %v652 = vadd.f32 %v595, %v646
        %v653 = vadd.f32 %v596, %v647
        %v654 = vadd.f32 %v597, %v648
        %v655 = vadd.f32 %v598, %v649
        %656 = vrot.lane.b32.xlu0 %v399, 127
        %v657 = vpop.permute.xlu0 %656
        %658 = vrot.lane.b32.xlu0 %v401, 127
        %v659 = vpop.permute.xlu0 %658
        %660 = vrot.lane.b32.xlu0 %v403, 127
        %v661 = vpop.permute.xlu0 %660
        %662 = vrot.lane.b32.xlu0 %v400, 127
        %v663 = vpop.permute.xlu0 %662
        %664 = vrot.lane.b32.xlu0 %v402, 127
        %v665 = vpop.permute.xlu0 %664
        %666 = vrot.lane.b32.xlu0 %v404, 127
        %v667 = vpop.permute.xlu0 %666
        %vm668 = vcmp.lt.s32.totalorder %v439, 127
        %v669 = vsel %vm668, %v657, %v663
        %v670 = vsel %vm668, %v659, %v665
        %v671 = vsel %vm668, %v661, %v667
        %v672 = vsel %vm668, %v663, %v657
        %v673 = vsel %vm668, %v665, %v659
        %v674 = vsel %vm668, %v667, %v661
        %675 = vset.pattern.permute.xlu0 5
        %676 = vperm.xlu0 %675, %v288
        %v677 = vpop.permute.xlu0 %676
        %679 = vset.pattern.permute.xlu0 5
        %680 = vperm.xlu0 %679, %v289
        %v681 = vpop.permute.xlu0 %680
        %683 = vset.pattern.permute.xlu0 5
        %684 = vperm.xlu0 %683, %v290
        %v685 = vpop.permute.xlu0 %684
        %v687 = vmul.f32 %v669, %v677
        %v688 = vmul.f32 %v672, %v677
        %v689 = vmul.f32 %v670, %v681
        %v690 = vmul.f32 %v673, %v681
        %v691 = vmul.f32 %v671, %v685
        %v692 = vmul.f32 %v674, %v685
        %v693 = vlaneseq
        %v694 = vshrl.u32 %v693, 7
        %v695 = vsub.s32 5, %v694
        %v696 = vrot.slane %v291, %v695
        %v697 = vlaneseq
        %v698 = vshrl.u32 %v697, 7
        %v699 = vsub.s32 5, %v698
        %v700 = vrot.slane %v292, %v699
        %v701 = vmul.f32 %v687, %v696
        %v702 = vmul.f32 %v688, %v700
        %v703 = vmul.f32 %v689, %v696
        %v704 = vmul.f32 %v690, %v700
        %v705 = vmul.f32 %v691, %v696
        %v706 = vmul.f32 %v692, %v700
        %v707 = vadd.f32 %v650, %v701
        %v708 = vadd.f32 %v651, %v702
        %v709 = vadd.f32 %v652, %v703
        %v710 = vadd.f32 %v653, %v704
        %v711 = vadd.f32 %v654, %v705
        %v712 = vadd.f32 %v655, %v706
        %713 = vrot.lane.b32.xlu0 %v399, 113
        %v714 = vpop.permute.xlu0 %713
        %715 = vrot.lane.b32.xlu0 %v401, 113
        %v716 = vpop.permute.xlu0 %715
        %717 = vrot.lane.b32.xlu0 %v403, 113
        %v718 = vpop.permute.xlu0 %717
        %719 = vrot.lane.b32.xlu0 %v400, 113
        %v720 = vpop.permute.xlu0 %719
        %721 = vrot.lane.b32.xlu0 %v402, 113
        %v722 = vpop.permute.xlu0 %721
        %723 = vrot.lane.b32.xlu0 %v404, 113
        %v724 = vpop.permute.xlu0 %723
        %vm725 = vcmp.lt.s32.totalorder %v439, 113
        %v726 = vsel %vm725, %v714, %v720
        %v727 = vsel %vm725, %v716, %v722
        %v728 = vsel %vm725, %v718, %v724
        %v729 = vsel %vm725, %v720, %v714
        %v730 = vsel %vm725, %v722, %v716
        %v731 = vsel %vm725, %v724, %v718
        %732 = vset.pattern.permute.xlu0 6
        %733 = vperm.xlu0 %732, %v288
        %v734 = vpop.permute.xlu0 %733
        %736 = vset.pattern.permute.xlu0 6
        %737 = vperm.xlu0 %736, %v289
        %v738 = vpop.permute.xlu0 %737
        %740 = vset.pattern.permute.xlu0 6
        %741 = vperm.xlu0 %740, %v290
        %v742 = vpop.permute.xlu0 %741
        %v744 = vmul.f32 %v726, %v734
        %v745 = vmul.f32 %v729, %v734
        %v746 = vmul.f32 %v727, %v738
        %v747 = vmul.f32 %v730, %v738
        %v748 = vmul.f32 %v728, %v742
        %v749 = vmul.f32 %v731, %v742
        %v750 = vlaneseq
        %v751 = vshrl.u32 %v750, 7
        %v752 = vsub.s32 6, %v751
        %v753 = vrot.slane %v291, %v752
        %v754 = vlaneseq
        %v755 = vshrl.u32 %v754, 7
        %v756 = vsub.s32 6, %v755
        %v757 = vrot.slane %v292, %v756
        %v758 = vmul.f32 %v744, %v753
        %v759 = vmul.f32 %v745, %v757
        %v760 = vmul.f32 %v746, %v753
        %v761 = vmul.f32 %v747, %v757
        %v762 = vmul.f32 %v748, %v753
        %v763 = vmul.f32 %v749, %v757
        %v764 = vadd.f32 %v707, %v758
        %v765 = vadd.f32 %v708, %v759
        %v766 = vadd.f32 %v709, %v760
        %v767 = vadd.f32 %v710, %v761
        %v768 = vadd.f32 %v711, %v762
        %v769 = vadd.f32 %v712, %v763
        %770 = vrot.lane.b32.xlu0 %v399, 112
        %v771 = vpop.permute.xlu0 %770
        %772 = vrot.lane.b32.xlu0 %v401, 112
        %v773 = vpop.permute.xlu0 %772
        %774 = vrot.lane.b32.xlu0 %v403, 112
        %v775 = vpop.permute.xlu0 %774
        %776 = vrot.lane.b32.xlu0 %v400, 112
        %v777 = vpop.permute.xlu0 %776
        %778 = vrot.lane.b32.xlu0 %v402, 112
        %v779 = vpop.permute.xlu0 %778
        %780 = vrot.lane.b32.xlu0 %v404, 112
        %v781 = vpop.permute.xlu0 %780
        %vm782 = vcmp.lt.s32.totalorder %v439, 112
        %v783 = vsel %vm782, %v771, %v777
        %v784 = vsel %vm782, %v773, %v779
        %v785 = vsel %vm782, %v775, %v781
        %v786 = vsel %vm782, %v777, %v771
        %v787 = vsel %vm782, %v779, %v773
        %v788 = vsel %vm782, %v781, %v775
        %789 = vset.pattern.permute.xlu0 7
        %790 = vperm.xlu0 %789, %v288
        %v791 = vpop.permute.xlu0 %790
        %793 = vset.pattern.permute.xlu0 7
        %794 = vperm.xlu0 %793, %v289
        %v795 = vpop.permute.xlu0 %794
        %797 = vset.pattern.permute.xlu0 7
        %798 = vperm.xlu0 %797, %v290
        %v799 = vpop.permute.xlu0 %798
        %v801 = vmul.f32 %v783, %v791
        %v802 = vmul.f32 %v786, %v791
        %v803 = vmul.f32 %v784, %v795
        %v804 = vmul.f32 %v787, %v795
        %v805 = vmul.f32 %v785, %v799
        %v806 = vmul.f32 %v788, %v799
        %v807 = vlaneseq
        %v808 = vshrl.u32 %v807, 7
        %v809 = vsub.s32 7, %v808
        %v810 = vrot.slane %v291, %v809
        %v811 = vlaneseq
        %v812 = vshrl.u32 %v811, 7
        %v813 = vsub.s32 7, %v812
        %v814 = vrot.slane %v292, %v813
        %v815 = vmul.f32 %v801, %v810
        %v816 = vmul.f32 %v802, %v814
        %v817 = vmul.f32 %v803, %v810
        %v818 = vmul.f32 %v804, %v814
        %v819 = vmul.f32 %v805, %v810
        %v820 = vmul.f32 %v806, %v814
        %v821 = vadd.f32 %v764, %v815
        %v822 = vadd.f32 %v765, %v816
        %v823 = vadd.f32 %v766, %v817
        %v824 = vadd.f32 %v767, %v818
        %v825 = vadd.f32 %v768, %v819
        %v826 = vadd.f32 %v769, %v820
        %827 = vrot.lane.b32.xlu0 %v399, 111
        %v828 = vpop.permute.xlu0 %827
        %829 = vrot.lane.b32.xlu0 %v401, 111
        %v830 = vpop.permute.xlu0 %829
        %831 = vrot.lane.b32.xlu0 %v403, 111
        %v832 = vpop.permute.xlu0 %831
        %833 = vrot.lane.b32.xlu0 %v400, 111
        %v834 = vpop.permute.xlu0 %833
        %835 = vrot.lane.b32.xlu0 %v402, 111
        %v836 = vpop.permute.xlu0 %835
        %837 = vrot.lane.b32.xlu0 %v404, 111
        %v838 = vpop.permute.xlu0 %837
        %vm839 = vcmp.lt.s32.totalorder %v439, 111
        %v840 = vsel %vm839, %v828, %v834
        %v841 = vsel %vm839, %v830, %v836
        %v842 = vsel %vm839, %v832, %v838
        %v843 = vsel %vm839, %v834, %v828
        %v844 = vsel %vm839, %v836, %v830
        %v845 = vsel %vm839, %v838, %v832
        %846 = vset.pattern.permute.xlu0 8
        %847 = vperm.xlu0 %846, %v288
        %v848 = vpop.permute.xlu0 %847
        %850 = vset.pattern.permute.xlu0 8
        %851 = vperm.xlu0 %850, %v289
        %v852 = vpop.permute.xlu0 %851
        %854 = vset.pattern.permute.xlu0 8
        %855 = vperm.xlu0 %854, %v290
        %v856 = vpop.permute.xlu0 %855
        %v858 = vmul.f32 %v840, %v848
        %v859 = vmul.f32 %v843, %v848
        %v860 = vmul.f32 %v841, %v852
        %v861 = vmul.f32 %v844, %v852
        %v862 = vmul.f32 %v842, %v856
        %v863 = vmul.f32 %v845, %v856
        %v864 = vlaneseq
        %v865 = vshrl.u32 %v864, 7
        %v866 = vsub.s32 0, %v865
        %v867 = vrot.slane %v293, %v866
        %v868 = vlaneseq
        %v869 = vshrl.u32 %v868, 7
        %v870 = vsub.s32 0, %v869
        %v871 = vrot.slane %v294, %v870
        %v872 = vmul.f32 %v858, %v867
        %v873 = vmul.f32 %v859, %v871
        %v874 = vmul.f32 %v860, %v867
        %v875 = vmul.f32 %v861, %v871
        %v876 = vmul.f32 %v862, %v867
        %v877 = vmul.f32 %v863, %v871
        %v878 = vadd.f32 %v821, %v872
        %v879 = vadd.f32 %v822, %v873
        %v880 = vadd.f32 %v823, %v874
        %v881 = vadd.f32 %v824, %v875
        %v882 = vadd.f32 %v825, %v876
        %v883 = vadd.f32 %v826, %v877
        %884 = vset.pattern.permute.xlu0 1
        %885 = vperm.xlu0 %884, %v295
        %v886 = vpop.permute.xlu0 %885
        %888 = vset.pattern.permute.xlu0 1
        %889 = vperm.xlu0 %888, %v296
        %v890 = vpop.permute.xlu0 %889
        %892 = vset.pattern.permute.xlu0 1
        %893 = vperm.xlu0 %892, %v297
        %v894 = vpop.permute.xlu0 %893
        %v896 = vadd.f32 %v878, %v886
        %v897 = vadd.f32 %v879, %v886
        %v898 = vadd.f32 %v880, %v890
        %v899 = vadd.f32 %v881, %v890
        %v900 = vadd.f32 %v882, %v894
        %v901 = vadd.f32 %v883, %v894
        %v902 = vmax.f32 %v896, 0.0
        %v903 = vmax.f32 %v897, 0.0
        %v904 = vmax.f32 %v898, 0.0
        %v905 = vmax.f32 %v899, 0.0
        %v906 = vmax.f32 %v900, 0.0
        %v907 = vmax.f32 %v901, 0.0
        %v908 = vmin.f32 %v902, 6.0
        %v909 = vmin.f32 %v903, 6.0
        %v910 = vmin.f32 %v904, 6.0
        %v911 = vmin.f32 %v905, 6.0
        %v912 = vmin.f32 %v906, 6.0
        %v913 = vmin.f32 %v907, 6.0
        %v914 = vpack.c.bf16 %v910, %v908
        %v915 = vpack.c.bf16 %v911, %v909
        %v916 = vpack.c.bf16 %v912, %v912
        %v917 = vpack.c.bf16 %v913, %v913
        %919 = vset.pattern.permute.xlu0 0
        %920 = vperm.xlu0 %919, %v298
        %v921 = vpop.permute.xlu0 %920
        %vm923 = vcmask 195584
        %v925 = vsel %vm923, %v287, 0
        %vm927 = vcmask 1043456
        %v929 = vsel %vm927, %v916, 0
        %v932 = vsel %vm927, %v917, 0
        %934 = vmatprep.subr.bf16.mxu0 %v915
        %935 = vmatpush1.bf16.msra.mxu0 %v914
        %936 = vmatprep.subr.bf16.mxu0 %v932
        %937 = vmatpush1.bf16.msra.mxu0 %v929
        %938 = vmatprep.subr.bf16.mxu0 0
        %939 = vmatpush1.bf16.msra.mxu0 0
        %940 = vmatprep.subr.bf16.mxu0 0
        %941 = vmatpush1.bf16.msra.mxu0 0
        %942 = vmatprep.subr.bf16.mxu0 0
        %943 = vmatpush1.bf16.msra.mxu0 0
        %944 = vmatprep.subr.bf16.mxu0 0
        %945 = vmatpush1.bf16.msra.mxu0 0
        %946 = vmatprep.subr.bf16.mxu0 0
        %947 = vmatpush1.bf16.msra.mxu0 0
        %948 = vmatprep.subr.bf16.mxu0 0
        %949 = vmatpush1.bf16.msra.mxu0 0
        %950 = vmatprep.subr.bf16.mxu0 0
        %951 = vmatpush1.bf16.msra.mxu0 0
        %952 = vmatprep.subr.bf16.mxu0 0
        %953 = vmatpush1.bf16.msra.mxu0 0
        %954 = vmatprep.subr.bf16.mxu0 0
        %955 = vmatpush1.bf16.msra.mxu0 0
        %956 = vmatprep.subr.bf16.mxu0 0
        %957 = vmatpush1.bf16.msra.mxu0 0
        %958 = vmatprep.subr.bf16.mxu0 0
        %959 = vmatpush1.bf16.msra.mxu0 0
        %960 = vmatprep.subr.bf16.mxu0 0
        %961 = vmatpush1.bf16.msra.mxu0 0
        %962 = vmatprep.subr.bf16.mxu0 0
        %963 = vmatpush1.bf16.msra.mxu0 0
        %964 = vmatprep.subr.bf16.mxu0 0
        %965 = vmatpush1.bf16.msra.mxu0 0
        %966 = vmatprep.mubr.bf16.mxu0 0
        %967 = vmatmul.mubr.bf16.gmra.mrb[0].mxu0 %v925
        %v968 = vpop.f32.mrb[0].mxu0
        %v969 = vadd.f32 %v921, %v968
        %v970 = vpop.f32.mrb[0].mxu0
        %v971 = vadd.f32 %v921, %v970
        %v972 = vpop.f32.mrb[0].mxu0
        %v973 = vpop.f32.mrb[0].mxu0
        %974 = vdwg.mxu0
        %v975 = vadd.f32 %v969, %v299
        %v976 = vadd.f32 %v971, %v301
        %v979 = vcombine.low %v975, %v976
        %981 = vst [vmem:[%s274] sm:$0xff] %v979
        %s982 = scalar_lea.vmem %s280, 8
        %v983 = vld [vmem:[%s982] sm:$0xff]
        %v985 = vcombine.high %v983, %v983
        %v987 = vpack.c.bf16 %v983, %v983
        %v988 = vpack.c.bf16 %v985, %v985
        %v990 = vsel %vm335, %v987, 0
        %v993 = vsel %vm335, %v988, 0
        %995 = vmatprep.subr.bf16.mxu0 %v993
        %996 = vmatpush1.bf16.msra.mxu0 %v990
        %997 = vmatprep.subr.bf16.mxu0 0
        %998 = vmatpush1.bf16.msra.mxu0 0
        %999 = vmatprep.subr.bf16.mxu0 0
        %1000 = vmatpush1.bf16.msra.mxu0 0
        %1001 = vmatprep.subr.bf16.mxu0 0
        %1002 = vmatpush1.bf16.msra.mxu0 0
        %1003 = vmatprep.subr.bf16.mxu0 0
        %1004 = vmatpush1.bf16.msra.mxu0 0
        %1005 = vmatprep.subr.bf16.mxu0 0
        %1006 = vmatpush1.bf16.msra.mxu0 0
        %1007 = vmatprep.subr.bf16.mxu0 0
        %1008 = vmatpush1.bf16.msra.mxu0 0
        %1009 = vmatprep.subr.bf16.mxu0 0
        %1010 = vmatpush1.bf16.msra.mxu0 0
        %1011 = vmatprep.subr.bf16.mxu0 0
        %1012 = vmatpush1.bf16.msra.mxu0 0
        %1013 = vmatprep.subr.bf16.mxu0 0
        %1014 = vmatpush1.bf16.msra.mxu0 0
        %1015 = vmatprep.subr.bf16.mxu0 0
        %1016 = vmatpush1.bf16.msra.mxu0 0
        %1017 = vmatprep.subr.bf16.mxu0 0
        %1018 = vmatpush1.bf16.msra.mxu0 0
        %1019 = vmatprep.subr.bf16.mxu0 0
        %1020 = vmatpush1.bf16.msra.mxu0 0
        %1021 = vmatprep.subr.bf16.mxu0 0
        %1022 = vmatpush1.bf16.msra.mxu0 0
        %1023 = vmatprep.subr.bf16.mxu0 0
        %1024 = vmatpush1.bf16.msra.mxu0 0
        %1025 = vmatprep.subr.bf16.mxu0 0
        %1026 = vmatpush1.bf16.msra.mxu0 0
        %1027 = vmatprep.mubr.bf16.mxu0 0
        %1028 = vmatmul.mubr.bf16.gmra.mrb[0].mxu0 %v330
        %v1029 = vpop.f32.mrb[0].mxu0
        %v1030 = vadd.f32 %v308, %v1029
        %v1031 = vpop.f32.mrb[0].mxu0
        %v1032 = vadd.f32 %v308, %v1031
        %v1033 = vpop.f32.mrb[0].mxu0
        %v1034 = vadd.f32 %v313, %v1033
        %v1035 = vpop.f32.mrb[0].mxu0
        %v1036 = vadd.f32 %v313, %v1035
        %1037 = vmatprep.mubr.bf16.mxu0 0
        %1038 = vmatmul.mubr.bf16.gmra.mrb[0].mxu0 %v333
        %v1039 = vpop.f32.mrb[0].mxu0
        %v1040 = vadd.f32 %v318, %v1039
        %v1041 = vpop.f32.mrb[0].mxu0
        %v1042 = vadd.f32 %v318, %v1041
        %v1043 = vpop.f32.mrb[0].mxu0
        %v1044 = vpop.f32.mrb[0].mxu0
        %1045 = vdwg.mxu0
        %v1046 = vmax.f32 %v1030, 0.0
        %v1047 = vmax.f32 %v1032, 0.0
        %v1048 = vmax.f32 %v1034, 0.0
        %v1049 = vmax.f32 %v1036, 0.0
        %v1050 = vmax.f32 %v1040, 0.0
        %v1051 = vmax.f32 %v1042, 0.0
        %v1052 = vmin.f32 %v1046, 6.0
        %v1053 = vmin.f32 %v1047, 6.0
        %v1054 = vmin.f32 %v1048, 6.0
        %v1055 = vmin.f32 %v1049, 6.0
        %v1056 = vmin.f32 %v1050, 6.0
        %v1057 = vmin.f32 %v1051, 6.0
        %v1058 = vmul.f32 %v1052, %v408
        %v1059 = vmul.f32 %v1053, %v408
        %v1060 = vmul.f32 %v1054, %v413
        %v1061 = vmul.f32 %v1055, %v413
        %v1062 = vmul.f32 %v1056, %v418
        %v1063 = vmul.f32 %v1057, %v418
        %1064 = vrot.lane.b32.xlu0 %v1052, 17
        %v1065 = vpop.permute.xlu0 %1064
        %1066 = vrot.lane.b32.xlu0 %v1054, 17
        %v1067 = vpop.permute.xlu0 %1066
        %1068 = vrot.lane.b32.xlu0 %v1056, 17
        %v1069 = vpop.permute.xlu0 %1068
        %1070 = vrot.lane.b32.xlu0 %v1053, 17
        %v1071 = vpop.permute.xlu0 %1070
        %1072 = vrot.lane.b32.xlu0 %v1055, 17
        %v1073 = vpop.permute.xlu0 %1072
        %1074 = vrot.lane.b32.xlu0 %v1057, 17
        %v1075 = vpop.permute.xlu0 %1074
        %v1076 = vsel %vm440, %v1065, %v1071
        %v1077 = vsel %vm440, %v1067, %v1073
        %v1078 = vsel %vm440, %v1069, %v1075
        %v1079 = vsel %vm440, %v1071, %v1065
        %v1080 = vsel %vm440, %v1073, %v1067
        %v1081 = vsel %vm440, %v1075, %v1069
        %v1082 = vmul.f32 %v1079, %v449
        %v1083 = vmul.f32 %v1076, %v449
        %v1084 = vmul.f32 %v1080, %v453
        %v1085 = vmul.f32 %v1077, %v453
        %v1086 = vmul.f32 %v1081, %v457
        %v1087 = vmul.f32 %v1078, %v457
        %v1088 = vmul.f32 %v1082, %v468
        %v1089 = vmul.f32 %v1083, %v472
        %v1090 = vmul.f32 %v1084, %v468
        %v1091 = vmul.f32 %v1085, %v472
        %v1092 = vmul.f32 %v1086, %v468
        %v1093 = vmul.f32 %v1087, %v472
        %v1094 = vadd.f32 %v1058, %v1088
        %v1095 = vadd.f32 %v1059, %v1089
        %v1096 = vadd.f32 %v1060, %v1090
        %v1097 = vadd.f32 %v1061, %v1091
        %v1098 = vadd.f32 %v1062, %v1092
        %v1099 = vadd.f32 %v1063, %v1093
        %1100 = vrot.lane.b32.xlu0 %v1052, 16
        %v1101 = vpop.permute.xlu0 %1100
        %1102 = vrot.lane.b32.xlu0 %v1054, 16
        %v1103 = vpop.permute.xlu0 %1102
        %1104 = vrot.lane.b32.xlu0 %v1056, 16
        %v1105 = vpop.permute.xlu0 %1104
        %1106 = vrot.lane.b32.xlu0 %v1053, 16
        %v1107 = vpop.permute.xlu0 %1106
        %1108 = vrot.lane.b32.xlu0 %v1055, 16
        %v1109 = vpop.permute.xlu0 %1108
        %1110 = vrot.lane.b32.xlu0 %v1057, 16
        %v1111 = vpop.permute.xlu0 %1110
        %v1112 = vsel %vm497, %v1101, %v1107
        %v1113 = vsel %vm497, %v1103, %v1109
        %v1114 = vsel %vm497, %v1105, %v1111
        %v1115 = vsel %vm497, %v1107, %v1101
        %v1116 = vsel %vm497, %v1109, %v1103
        %v1117 = vsel %vm497, %v1111, %v1105
        %v1118 = vmul.f32 %v1115, %v506
        %v1119 = vmul.f32 %v1112, %v506
        %v1120 = vmul.f32 %v1116, %v510
        %v1121 = vmul.f32 %v1113, %v510
        %v1122 = vmul.f32 %v1117, %v514
        %v1123 = vmul.f32 %v1114, %v514
        %v1124 = vmul.f32 %v1118, %v525
        %v1125 = vmul.f32 %v1119, %v529
        %v1126 = vmul.f32 %v1120, %v525
        %v1127 = vmul.f32 %v1121, %v529
        %v1128 = vmul.f32 %v1122, %v525
        %v1129 = vmul.f32 %v1123, %v529
        %v1130 = vadd.f32 %v1094, %v1124
        %v1131 = vadd.f32 %v1095, %v1125
        %v1132 = vadd.f32 %v1096, %v1126
        %v1133 = vadd.f32 %v1097, %v1127
        %v1134 = vadd.f32 %v1098, %v1128
        %v1135 = vadd.f32 %v1099, %v1129
        %1136 = vrot.lane.b32.xlu0 %v1052, 15
        %v1137 = vpop.permute.xlu0 %1136
        %1138 = vrot.lane.b32.xlu0 %v1054, 15
        %v1139 = vpop.permute.xlu0 %1138
        %1140 = vrot.lane.b32.xlu0 %v1056, 15
        %v1141 = vpop.permute.xlu0 %1140
        %1142 = vrot.lane.b32.xlu0 %v1053, 15
        %v1143 = vpop.permute.xlu0 %1142
        %1144 = vrot.lane.b32.xlu0 %v1055, 15
        %v1145 = vpop.permute.xlu0 %1144
        %1146 = vrot.lane.b32.xlu0 %v1057, 15
        %v1147 = vpop.permute.xlu0 %1146
        %v1148 = vsel %vm554, %v1137, %v1143
        %v1149 = vsel %vm554, %v1139, %v1145
        %v1150 = vsel %vm554, %v1141, %v1147
        %v1151 = vsel %vm554, %v1143, %v1137
        %v1152 = vsel %vm554, %v1145, %v1139
        %v1153 = vsel %vm554, %v1147, %v1141
        %v1154 = vmul.f32 %v1151, %v563
        %v1155 = vmul.f32 %v1148, %v563
        %v1156 = vmul.f32 %v1152, %v567
        %v1157 = vmul.f32 %v1149, %v567
        %v1158 = vmul.f32 %v1153, %v571
        %v1159 = vmul.f32 %v1150, %v571
        %v1160 = vmul.f32 %v1154, %v582
        %v1161 = vmul.f32 %v1155, %v586
        %v1162 = vmul.f32 %v1156, %v582
        %v1163 = vmul.f32 %v1157, %v586
        %v1164 = vmul.f32 %v1158, %v582
        %v1165 = vmul.f32 %v1159, %v586
        %v1166 = vadd.f32 %v1130, %v1160
        %v1167 = vadd.f32 %v1131, %v1161
        %v1168 = vadd.f32 %v1132, %v1162
        %v1169 = vadd.f32 %v1133, %v1163
        %v1170 = vadd.f32 %v1134, %v1164
        %v1171 = vadd.f32 %v1135, %v1165
        %1172 = vrot.lane.b32.xlu0 %v1052, 1
        %v1173 = vpop.permute.xlu0 %1172
        %1174 = vrot.lane.b32.xlu0 %v1054, 1
        %v1175 = vpop.permute.xlu0 %1174
        %1176 = vrot.lane.b32.xlu0 %v1056, 1
        %v1177 = vpop.permute.xlu0 %1176
        %1178 = vrot.lane.b32.xlu0 %v1053, 1
        %v1179 = vpop.permute.xlu0 %1178
        %1180 = vrot.lane.b32.xlu0 %v1055, 1
        %v1181 = vpop.permute.xlu0 %1180
        %1182 = vrot.lane.b32.xlu0 %v1057, 1
        %v1183 = vpop.permute.xlu0 %1182
        %v1184 = vsel %vm611, %v1173, %v1179
        %v1185 = vsel %vm611, %v1175, %v1181
        %v1186 = vsel %vm611, %v1177, %v1183
        %v1187 = vsel %vm611, %v1179, %v1173
        %v1188 = vsel %vm611, %v1181, %v1175
        %v1189 = vsel %vm611, %v1183, %v1177
        %v1190 = vmul.f32 %v1187, %v620
        %v1191 = vmul.f32 %v1184, %v620
        %v1192 = vmul.f32 %v1188, %v624
        %v1193 = vmul.f32 %v1185, %v624
        %v1194 = vmul.f32 %v1189, %v628
        %v1195 = vmul.f32 %v1186, %v628
        %v1196 = vmul.f32 %v1190, %v639
        %v1197 = vmul.f32 %v1191, %v643
        %v1198 = vmul.f32 %v1192, %v639
        %v1199 = vmul.f32 %v1193, %v643
        %v1200 = vmul.f32 %v1194, %v639
        %v1201 = vmul.f32 %v1195, %v643
        %v1202 = vadd.f32 %v1166, %v1196
        %v1203 = vadd.f32 %v1167, %v1197
        %v1204 = vadd.f32 %v1168, %v1198
        %v1205 = vadd.f32 %v1169, %v1199
        %v1206 = vadd.f32 %v1170, %v1200
        %v1207 = vadd.f32 %v1171, %v1201
        %1208 = vrot.lane.b32.xlu0 %v1052, 127
        %v1209 = vpop.permute.xlu0 %1208
        %1210 = vrot.lane.b32.xlu0 %v1054, 127
        %v1211 = vpop.permute.xlu0 %1210
        %1212 = vrot.lane.b32.xlu0 %v1056, 127
        %v1213 = vpop.permute.xlu0 %1212
        %1214 = vrot.lane.b32.xlu0 %v1053, 127
        %v1215 = vpop.permute.xlu0 %1214
        %1216 = vrot.lane.b32.xlu0 %v1055, 127
        %v1217 = vpop.permute.xlu0 %1216
        %1218 = vrot.lane.b32.xlu0 %v1057, 127
        %v1219 = vpop.permute.xlu0 %1218
        %v1220 = vsel %vm668, %v1209, %v1215
        %v1221 = vsel %vm668, %v1211, %v1217
        %v1222 = vsel %vm668, %v1213, %v1219
        %v1223 = vsel %vm668, %v1215, %v1209
        %v1224 = vsel %vm668, %v1217, %v1211
        %v1225 = vsel %vm668, %v1219, %v1213
        %v1226 = vmul.f32 %v1220, %v677
        %v1227 = vmul.f32 %v1223, %v677
        %v1228 = vmul.f32 %v1221, %v681
        %v1229 = vmul.f32 %v1224, %v681
        %v1230 = vmul.f32 %v1222, %v685
        %v1231 = vmul.f32 %v1225, %v685
        %v1232 = vmul.f32 %v1226, %v696
        %v1233 = vmul.f32 %v1227, %v700
        %v1234 = vmul.f32 %v1228, %v696
        %v1235 = vmul.f32 %v1229, %v700
        %v1236 = vmul.f32 %v1230, %v696
        %v1237 = vmul.f32 %v1231, %v700
        %v1238 = vadd.f32 %v1202, %v1232
        %v1239 = vadd.f32 %v1203, %v1233
        %v1240 = vadd.f32 %v1204, %v1234
        %v1241 = vadd.f32 %v1205, %v1235
        %v1242 = vadd.f32 %v1206, %v1236
        %v1243 = vadd.f32 %v1207, %v1237
        %1244 = vrot.lane.b32.xlu0 %v1052, 113
        %v1245 = vpop.permute.xlu0 %1244
        %1246 = vrot.lane.b32.xlu0 %v1054, 113
        %v1247 = vpop.permute.xlu0 %1246
        %1248 = vrot.lane.b32.xlu0 %v1056, 113
        %v1249 = vpop.permute.xlu0 %1248
        %1250 = vrot.lane.b32.xlu0 %v1053, 113
        %v1251 = vpop.permute.xlu0 %1250
        %1252 = vrot.lane.b32.xlu0 %v1055, 113
        %v1253 = vpop.permute.xlu0 %1252
        %1254 = vrot.lane.b32.xlu0 %v1057, 113
        %v1255 = vpop.permute.xlu0 %1254
        %v1256 = vsel %vm725, %v1245, %v1251
        %v1257 = vsel %vm725, %v1247, %v1253
        %v1258 = vsel %vm725, %v1249, %v1255
        %v1259 = vsel %vm725, %v1251, %v1245
        %v1260 = vsel %vm725, %v1253, %v1247
        %v1261 = vsel %vm725, %v1255, %v1249
        %v1262 = vmul.f32 %v1256, %v734
        %v1263 = vmul.f32 %v1259, %v734
        %v1264 = vmul.f32 %v1257, %v738
        %v1265 = vmul.f32 %v1260, %v738
        %v1266 = vmul.f32 %v1258, %v742
        %v1267 = vmul.f32 %v1261, %v742
        %v1268 = vmul.f32 %v1262, %v753
        %v1269 = vmul.f32 %v1263, %v757
        %v1270 = vmul.f32 %v1264, %v753
        %v1271 = vmul.f32 %v1265, %v757
        %v1272 = vmul.f32 %v1266, %v753
        %v1273 = vmul.f32 %v1267, %v757
        %v1274 = vadd.f32 %v1238, %v1268
        %v1275 = vadd.f32 %v1239, %v1269
        %v1276 = vadd.f32 %v1240, %v1270
        %v1277 = vadd.f32 %v1241, %v1271
        %v1278 = vadd.f32 %v1242, %v1272
        %v1279 = vadd.f32 %v1243, %v1273
        %1280 = vrot.lane.b32.xlu0 %v1052, 112
        %v1281 = vpop.permute.xlu0 %1280
        %1282 = vrot.lane.b32.xlu0 %v1054, 112
        %v1283 = vpop.permute.xlu0 %1282
        %1284 = vrot.lane.b32.xlu0 %v1056, 112
        %v1285 = vpop.permute.xlu0 %1284
        %1286 = vrot.lane.b32.xlu0 %v1053, 112
        %v1287 = vpop.permute.xlu0 %1286
        %1288 = vrot.lane.b32.xlu0 %v1055, 112
        %v1289 = vpop.permute.xlu0 %1288
        %1290 = vrot.lane.b32.xlu0 %v1057, 112
        %v1291 = vpop.permute.xlu0 %1290
        %v1292 = vsel %vm782, %v1281, %v1287
        %v1293 = vsel %vm782, %v1283, %v1289
        %v1294 = vsel %vm782, %v1285, %v1291
        %v1295 = vsel %vm782, %v1287, %v1281
        %v1296 = vsel %vm782, %v1289, %v1283
        %v1297 = vsel %vm782, %v1291, %v1285
        %v1298 = vmul.f32 %v1292, %v791
        %v1299 = vmul.f32 %v1295, %v791
        %v1300 = vmul.f32 %v1293, %v795
        %v1301 = vmul.f32 %v1296, %v795
        %v1302 = vmul.f32 %v1294, %v799
        %v1303 = vmul.f32 %v1297, %v799
        %v1304 = vmul.f32 %v1298, %v810
        %v1305 = vmul.f32 %v1299, %v814
        %v1306 = vmul.f32 %v1300, %v810
        %v1307 = vmul.f32 %v1301, %v814
        %v1308 = vmul.f32 %v1302, %v810
        %v1309 = vmul.f32 %v1303, %v814
        %v1310 = vadd.f32 %v1274, %v1304
        %v1311 = vadd.f32 %v1275, %v1305
        %v1312 = vadd.f32 %v1276, %v1306
        %v1313 = vadd.f32 %v1277, %v1307
        %v1314 = vadd.f32 %v1278, %v1308
        %v1315 = vadd.f32 %v1279, %v1309
        %1316 = vrot.lane.b32.xlu0 %v1052, 111
        %v1317 = vpop.permute.xlu0 %1316
        %1318 = vrot.lane.b32.xlu0 %v1054, 111
        %v1319 = vpop.permute.xlu0 %1318
        %1320 = vrot.lane.b32.xlu0 %v1056, 111
        %v1321 = vpop.permute.xlu0 %1320
        %1322 = vrot.lane.b32.xlu0 %v1053, 111
        %v1323 = vpop.permute.xlu0 %1322
        %1324 = vrot.lane.b32.xlu0 %v1055, 111
        %v1325 = vpop.permute.xlu0 %1324
        %1326 = vrot.lane.b32.xlu0 %v1057, 111
        %v1327 = vpop.permute.xlu0 %1326
        %v1328 = vsel %vm839, %v1317, %v1323
        %v1329 = vsel %vm839, %v1319, %v1325
        %v1330 = vsel %vm839, %v1321, %v1327
        %v1331 = vsel %vm839, %v1323, %v1317
        %v1332 = vsel %vm839, %v1325, %v1319
        %v1333 = vsel %vm839, %v1327, %v1321
        %v1334 = vmul.f32 %v1328, %v848
        %v1335 = vmul.f32 %v1331, %v848
        %v1336 = vmul.f32 %v1329, %v852
        %v1337 = vmul.f32 %v1332, %v852
        %v1338 = vmul.f32 %v1330, %v856
        %v1339 = vmul.f32 %v1333, %v856
        %v1340 = vmul.f32 %v1334, %v867
        %v1341 = vmul.f32 %v1335, %v871
        %v1342 = vmul.f32 %v1336, %v867
        %v1343 = vmul.f32 %v1337, %v871
        %v1344 = vmul.f32 %v1338, %v867
        %v1345 = vmul.f32 %v1339, %v871
        %v1346 = vadd.f32 %v1310, %v1340
        %v1347 = vadd.f32 %v1311, %v1341
        %v1348 = vadd.f32 %v1312, %v1342
        %v1349 = vadd.f32 %v1313, %v1343
        %v1350 = vadd.f32 %v1314, %v1344
        %v1351 = vadd.f32 %v1315, %v1345
        %v1352 = vadd.f32 %v1346, %v886
        %v1353 = vadd.f32 %v1347, %v886
        %v1354 = vadd.f32 %v1348, %v890
        %v1355 = vadd.f32 %v1349, %v890
        %v1356 = vadd.f32 %v1350, %v894
        %v1357 = vadd.f32 %v1351, %v894
        %v1358 = vmax.f32 %v1352, 0.0
        %v1359 = vmax.f32 %v1353, 0.0
        %v1360 = vmax.f32 %v1354, 0.0
        %v1361 = vmax.f32 %v1355, 0.0
        %v1362 = vmax.f32 %v1356, 0.0
        %v1363 = vmax.f32 %v1357, 0.0
        %v1364 = vmin.f32 %v1358, 6.0
        %v1365 = vmin.f32 %v1359, 6.0
        %v1366 = vmin.f32 %v1360, 6.0
        %v1367 = vmin.f32 %v1361, 6.0
        %v1368 = vmin.f32 %v1362, 6.0
        %v1369 = vmin.f32 %v1363, 6.0
        %v1370 = vpack.c.bf16 %v1366, %v1364
        %v1371 = vpack.c.bf16 %v1367, %v1365
        %v1372 = vpack.c.bf16 %v1368, %v1368
        %v1373 = vpack.c.bf16 %v1369, %v1369
        %v1375 = vsel %vm927, %v1372, 0
        %v1378 = vsel %vm927, %v1373, 0
        %1380 = vmatprep.subr.bf16.mxu0 %v1371
        %1381 = vmatpush1.bf16.msra.mxu0 %v1370
        %1382 = vmatprep.subr.bf16.mxu0 %v1378
        %1383 = vmatpush1.bf16.msra.mxu0 %v1375
        %1384 = vmatprep.subr.bf16.mxu0 0
        %1385 = vmatpush1.bf16.msra.mxu0 0
        %1386 = vmatprep.subr.bf16.mxu0 0
        %1387 = vmatpush1.bf16.msra.mxu0 0
        %1388 = vmatprep.subr.bf16.mxu0 0
        %1389 = vmatpush1.bf16.msra.mxu0 0
        %1390 = vmatprep.subr.bf16.mxu0 0
        %1391 = vmatpush1.bf16.msra.mxu0 0
        %1392 = vmatprep.subr.bf16.mxu0 0
        %1393 = vmatpush1.bf16.msra.mxu0 0
        %1394 = vmatprep.subr.bf16.mxu0 0
        %1395 = vmatpush1.bf16.msra.mxu0 0
        %1396 = vmatprep.subr.bf16.mxu0 0
        %1397 = vmatpush1.bf16.msra.mxu0 0
        %1398 = vmatprep.subr.bf16.mxu0 0
        %1399 = vmatpush1.bf16.msra.mxu0 0
        %1400 = vmatprep.subr.bf16.mxu0 0
        %1401 = vmatpush1.bf16.msra.mxu0 0
        %1402 = vmatprep.subr.bf16.mxu0 0
        %1403 = vmatpush1.bf16.msra.mxu0 0
        %1404 = vmatprep.subr.bf16.mxu0 0
        %1405 = vmatpush1.bf16.msra.mxu0 0
        %1406 = vmatprep.subr.bf16.mxu0 0
        %1407 = vmatpush1.bf16.msra.mxu0 0
        %1408 = vmatprep.subr.bf16.mxu0 0
        %1409 = vmatpush1.bf16.msra.mxu0 0
        %1410 = vmatprep.subr.bf16.mxu0 0
        %1411 = vmatpush1.bf16.msra.mxu0 0
        %1412 = vmatprep.mubr.bf16.mxu0 0
        %1413 = vmatmul.mubr.bf16.gmra.mrb[0].mxu0 %v925
        %v1414 = vpop.f32.mrb[0].mxu0
        %v1415 = vadd.f32 %v921, %v1414
        %v1416 = vpop.f32.mrb[0].mxu0
        %v1417 = vadd.f32 %v921, %v1416
        %v1418 = vpop.f32.mrb[0].mxu0
        %v1419 = vpop.f32.mrb[0].mxu0
        %1420 = vdwg.mxu0
        %v1421 = vadd.f32 %v1415, %v983
        %v1422 = vadd.f32 %v1417, %v985
        %v1425 = vcombine.low %v1421, %v1422
        %s1427 = scalar_lea.vmem %s274, 8 [#allocation2]
        %1428 = vst [vmem:[%s1427] sm:$0xff] %v1425
        %s1429 = sand.u32 %s181, 1
        %s1430 = scalar_lea.sflag [#allocation3], %s1429
        %s1431 = sand.u32 %s181, 1
        %s1432 = smul.addr %s1431, 16
        %s1433 = scalar_lea.vmem [#allocation2], %s1432
        // Predicated region
        $region49: #{tpu_custom_call.1} parent=47 // pred_check
          %p1434 = pneg %p191
        $region50: #{tpu_custom_call.1} parent=47 // pred_check_branch
          %1436 = sbr.rel (%p1434) target = $region52
        $region51: #{tpu_custom_call.1} parent=47 // pred_region
          %s1437 = smul.u32 2, %s21
          %s1439 = ssub.s32 256, 256
          %1440 = vsyncadd %s1430, %s1439
          %s1441 = smul.addr %s1437, 2
          %s1442 = smul.addr %s1441, 64
          %s1443 = scalar_lea.hbm %s7, %s1442
          %s1444 = sshll.u32 %s1433, 4
          %s1445 = int_to_ptr.vmem [resolvable:$true] %s1444
          %1450 = dma.vmem_to_hbm [thread:$0]  %s1445, 256, %s1443, %s1430, 128, 128, 8
        $region52: #{tpu_custom_call.1} parent=47 // pred_fallthru
          _
      $region48: #{tpu_custom_call.1} parent=5 // pred_fallthru
        _
      %p1451 = scmp.le.s32.totalorder 2, %s16
      // Predicated region
      $region53: #{tpu_custom_call.1} parent=5 // pred_check
        %p1452 = pneg %p1451
      $region54: #{tpu_custom_call.1} parent=5 // pred_check_branch
        %1454 = sbr.rel (%p1452) target = $region56
      $region55: #{tpu_custom_call.1} parent=5 // pred_region
        %s1455 = ssub.s32 %s16, 2
        // Predicated region
        $region57: #{tpu_custom_call.1} parent=55 // pred_check
          %p1456 = pneg %p197
        $region58: #{tpu_custom_call.1} parent=55 // pred_check_branch
          %1458 = sbr.rel (%p1456) target = $region60
        $region59: #{tpu_custom_call.1} parent=55 // pred_region
          %s1459 = sand.u32 %s182, 1
          %s1460 = scalar_lea.sflag [#allocation3], %s1459
          %s1461 = sand.u32 %s182, 1
          %s1462 = smul.addr %s1461, 16
          %s1463 = scalar_lea.vmem [#allocation2], %s1462
          %1464 = dma.done %s1460, 256
        $region60: #{tpu_custom_call.1} parent=55 // pred_fallthru
          _
      $region56: #{tpu_custom_call.1} parent=5 // pred_fallthru
        _
    $region6: #{tpu_custom_call.1} parent=1 // loop_footer
      %s20 = sadd.s32 1, %s16
    $region7: #{tpu_custom_call.1} parent=1 // loop_footer_branch
      %15 = sbr.rel target = $region3
    $region8: #{tpu_custom_call.1} parent=1 // loop_exit
      _
    %1465 = vsyncpa [#allocation3], 1
    %s1466 = scalar_lea.sflag [#allocation3], 1
    %1467 = vsyncpa %s1466, 1

</llo_original>
